<compile_context>
chip_gen: v5e
topology: v5e:2x2
jax: 0.10.0
libtpu: 0.0.40
codegen_flags: <defaults>
</compile_context>

<pallas_src>
import functools

import jax
import jax.numpy as jnp
from jax.experimental import pallas as pl
from jax.experimental.pallas import tpu as pltpu

LANE = 128     # lane width  (last-dim tiling)
SUBLANE = 8    # sublane width (second-minor tiling, f32)


def _round_up(v, m):
    return ((v + m - 1) // m) * m


def _vmem_capacity_bytes():
    """Physical per-core VMEM, conservative fallback = v7x's 64 MiB."""
    try:
        return int(pltpu.get_tpu_info().vmem_capacity_bytes)
    except Exception:
        return 64 * 1024 * 1024


# ---------------------------------------------------------------------------
# Fused kernel: one grid step, unrolled layer loop, everything VMEM-resident
# ---------------------------------------------------------------------------

def _gin_fused_kernel(eps_ref, adj_ref, x_ref, pool_ref,
                      w1_ref, b1_ref, w2_ref, b2_ref, bn_s_ref, bn_b_ref,
                      fw1_ref, fb1_ref, fw2_ref, fb2_ref, fw3_ref, fb3_ref,
                      out_ref, *, num_layers, num_classes):
    """Per layer (statically unrolled):
         h <- relu( BN( relu( relu( ((1+eps)*h + adj@h) @ W1 + b1 ) @ W2 + b2 ) ) )
       then:
         out <- log_softmax( fc3( relu(fc2( relu(fc1( pool @ h )) )) ) )
       All matmuls are bf16 x bf16 -> f32 on the MXU; elementwise math is f32.
    """
    h = x_ref[...]                                      # bf16 node state

    for l in range(num_layers):                         # static unroll
        # Neighbor sum-aggregation (bf16 MXU, f32 accumulate).
        agg = jnp.dot(adj_ref[...], h, preferred_element_type=jnp.float32)
        z = (1.0 + eps_ref[l]) * h.astype(jnp.float32) + agg

        # MLP (Linear -> ReLU -> Linear -> ReLU), then BatchNorm1d (eval,
        # running stats folded into scale/shift), then GIN.forward's outer relu.
        z = jnp.maximum(
            jnp.dot(z.astype(jnp.bfloat16), w1_ref[l],
                    preferred_element_type=jnp.float32) + b1_ref[l], 0.0)
        z = jnp.maximum(
            jnp.dot(z.astype(jnp.bfloat16), w2_ref[l],
                    preferred_element_type=jnp.float32) + b2_ref[l], 0.0)
        z = z * bn_s_ref[l] + bn_b_ref[l]
        h = jnp.maximum(z, 0.0).astype(jnp.bfloat16)    # bf16 carried state

    # Head: global_add_pool + fc1/relu -> fc2/relu -> fc3 -> log_softmax.
    # TODO(synk): dropout is identity in eval mode; training-mode dropout
    # (pltpu.prng_*) is not implemented.
    pooled = jnp.dot(pool_ref[...], h, preferred_element_type=jnp.float32)
    a = jnp.maximum(
        jnp.dot(pooled.astype(jnp.bfloat16), fw1_ref[...],
                preferred_element_type=jnp.float32) + fb1_ref[...], 0.0)
    a = jnp.maximum(
        jnp.dot(a.astype(jnp.bfloat16), fw2_ref[...],
                preferred_element_type=jnp.float32) + fb2_ref[...], 0.0)
    logits = (jnp.dot(a.astype(jnp.bfloat16), fw3_ref[...],
                      preferred_element_type=jnp.float32) + fb3_ref[...])

    # log_softmax restricted to the first `num_classes` (real) lanes.
    lane = jax.lax.broadcasted_iota(jnp.int32, logits.shape, 1)
    valid = lane < num_classes
    logits = jnp.where(valid, logits, -1e30)
    m = jnp.max(logits, axis=-1, keepdims=True)
    s = logits - m
    lse = jnp.log(jnp.sum(jnp.where(valid, jnp.exp(s), 0.0),
                          axis=-1, keepdims=True))
    out_ref[...] = s - lse


# ---------------------------------------------------------------------------
# pallas_call wrapper
# ---------------------------------------------------------------------------

def _fused_gin_call(eps, adj, x_p, pool, w1s, b1s, w2s, b2s, bn_s, bn_b,
                    fw1, fb1, fw2, fb2, fw3, fb3, *, num_classes):
    num_layers = w1s.shape[0]
    n_pad = adj.shape[0]
    h_pad = x_p.shape[1]
    g_pad = pool.shape[0]

    # Single grid step: every operand is VMEM-resident (DMA'd exactly once).
    # eps is a scalar-prefetch operand (lands in SMEM), so every index_map
    # receives it as a trailing positional arg.
    c2 = lambda i, eps_r: (0, 0)
    c3 = lambda i, eps_r: (0, 0, 0)

    in_specs = [
        pl.BlockSpec((n_pad, n_pad), c2),              # adj       (bf16)
        pl.BlockSpec((n_pad, h_pad), c2),              # x         (bf16)
        pl.BlockSpec((g_pad, n_pad), c2),              # pool      (bf16)
        pl.BlockSpec((num_layers, h_pad, h_pad), c3),  # W1 stack  (bf16)
        pl.BlockSpec((num_layers, 1, h_pad), c3),      # b1 stack  (f32)
        pl.BlockSpec((num_layers, h_pad, h_pad), c3),  # W2 stack  (bf16)
        pl.BlockSpec((num_layers, 1, h_pad), c3),      # b2 stack  (f32)
        pl.BlockSpec((num_layers, 1, h_pad), c3),      # bn scale  (f32)
        pl.BlockSpec((num_layers, 1, h_pad), c3),      # bn shift  (f32)
        pl.BlockSpec((h_pad, h_pad), c2),              # fc1 W     (bf16)
        pl.BlockSpec((1, h_pad), c2),                  # fc1 b     (f32)
        pl.BlockSpec((h_pad, h_pad), c2),              # fc2 W
        pl.BlockSpec((1, h_pad), c2),                  # fc2 b
        pl.BlockSpec((h_pad, h_pad), c2),              # fc3 W
        pl.BlockSpec((1, h_pad), c2),                  # fc3 b
    ]
    out_specs = pl.BlockSpec((g_pad, h_pad), c2)       # lane-dense (., 128) out

    args = (eps, adj, x_p, pool, w1s, b1s, w2s, b2s, bn_s, bn_b,
            fw1, fb1, fw2, fb2, fw3, fb3)

    # Generation-aware scoped-VMEM budget: actual resident bytes (x2 to cover
    # the pipeline's default buffering) + compiler headroom, capped at 85% of
    # physical VMEM (~54 MiB v7x, ~109 MiB v5e/v6e).
    operand_bytes = sum(int(a.size) * a.dtype.itemsize for a in args)
    out_bytes = g_pad * h_pad * 4
    needed = 2 * (operand_bytes + out_bytes) + (4 << 20)
    cap = int(0.85 * _vmem_capacity_bytes())
    vmem_limit = int(min(max(needed, 16 << 20), cap))

    flops = num_layers * (2 * n_pad * n_pad * h_pad
                          + 2 * 2 * n_pad * h_pad * h_pad)
    flops += 2 * g_pad * n_pad * h_pad + 3 * 2 * g_pad * h_pad * h_pad
    cost = pl.CostEstimate(flops=int(flops),
                           transcendentals=int(g_pad * (h_pad + 1)),
                           bytes_accessed=int(operand_bytes + out_bytes))

    return pl.pallas_call(
        functools.partial(_gin_fused_kernel,
                          num_layers=num_layers, num_classes=num_classes),
        out_shape=jax.ShapeDtypeStruct((g_pad, h_pad), jnp.float32),
        grid_spec=pltpu.PrefetchScalarGridSpec(
            num_scalar_prefetch=1,            # eps -> SMEM
            grid=(1,),                        # single step, layer loop unrolled
            in_specs=in_specs,
            out_specs=out_specs,
        ),
        compiler_params=pltpu.CompilerParams(
            dimension_semantics=("arbitrary",),
            vmem_limit_bytes=vmem_limit,
        ),
        cost_estimate=cost,
    )(*args)


# ---------------------------------------------------------------------------
# Parameter construction (deterministic, pre-padded to 128 lanes)
# ---------------------------------------------------------------------------

def _linear_padded(key, fan_in, fan_out, pad_in, pad_out):
    """PyTorch nn.Linear init, stored (in, out), zero-padded to lane width.
    Weight stored bf16 (MXU operand); bias stays f32."""
    kw, kb = jax.random.split(key)
    bound = 1.0 / float(fan_in) ** 0.5
    w = jax.random.uniform(kw, (fan_in, fan_out), jnp.float32, -bound, bound)
    b = jax.random.uniform(kb, (fan_out,), jnp.float32, -bound, bound)
    w_p = jnp.zeros((pad_in, pad_out), jnp.float32).at[:fan_in, :fan_out].set(w)
    b_p = jnp.zeros((1, pad_out), jnp.float32).at[0, :fan_out].set(b)
    return w_p.astype(jnp.bfloat16), b_p


def make_gin_params(key, features, hidden, num_layers, num_classes):
    h_pad = _round_up(max(features, hidden, hidden // 2, num_classes), LANE)
    bn_eps = 1e-5

    w1s, b1s, w2s, b2s, bn_ss, bn_bs = [], [], [], [], [], []
    for i in range(num_layers):
        key, k1, k2 = jax.random.split(key, 3)
        fin = features if i == 0 else hidden
        w1, b1 = _linear_padded(k1, fin, hidden, h_pad, h_pad)
        w2, b2 = _linear_padded(k2, hidden, hidden, h_pad, h_pad)
        # BatchNorm1d eval: gamma=1, beta=0, running_mean=0, running_var=1,
        # folded into affine scale/shift (zero in padded lanes -> they stay 0).
        # TODO(synk): if real running stats are ever loaded they must be folded
        # here: scale = gamma/sqrt(var+eps), shift = beta - mean*scale.
        bn_scale = jnp.zeros((1, h_pad), jnp.float32).at[0, :hidden].set(
            1.0 / (1.0 + bn_eps) ** 0.5)
        bn_shift = jnp.zeros((1, h_pad), jnp.float32)
        w1s.append(w1); b1s.append(b1); w2s.append(w2); b2s.append(b2)
        bn_ss.append(bn_scale); bn_bs.append(bn_shift)

    key, k1, k2, k3 = jax.random.split(key, 4)
    fw1, fb1 = _linear_padded(k1, hidden, hidden, h_pad, h_pad)
    fw2, fb2 = _linear_padded(k2, hidden, hidden // 2, h_pad, h_pad)
    fw3, fb3 = _linear_padded(k3, hidden // 2, num_classes, h_pad, h_pad)

    return dict(
        h_pad=h_pad,
        num_classes=num_classes,
        eps=jnp.zeros((num_layers,), jnp.float32),   # GINConv train_eps=True, init 0
        w1s=jnp.stack(w1s), b1s=jnp.stack(b1s),
        w2s=jnp.stack(w2s), b2s=jnp.stack(b2s),
        bn_scales=jnp.stack(bn_ss), bn_shifts=jnp.stack(bn_bs),
        fc1=(fw1, fb1), fc2=(fw2, fb2), fc3=(fw3, fb3),
    )


# ---------------------------------------------------------------------------
# Full forward (glue: densify graph structure, pad, one fused pallas_call)
# ---------------------------------------------------------------------------

def gin_forward(params, x, edge_index, batch, num_graphs):
    n, features = x.shape
    h_pad = params["h_pad"]
    num_classes = params["num_classes"]

    # Pad nodes to a multiple of 128 so the adjacency and all matmul dims are
    # lane-dense / MXU-friendly; padded rows/cols are zero and never reach the
    # pooled output (pool has zero columns for padded nodes).
    n_pad = _round_up(max(n, SUBLANE), LANE)
    g_pad = _round_up(max(num_graphs, 1), SUBLANE)

    src, dst = edge_index[0], edge_index[1]
    # dense adjacency: adj[dst, src] += 1  (message x_src summed into dst)
    adj_f32 = jnp.zeros((n_pad, n_pad), jnp.float32).at[dst, src].add(1.0)
    # bf16 adjacency halves HBM/VMEM traffic; exact while edge multiplicity<=256.
    try:
        max_mult = float(jnp.max(adj_f32))       # only evaluable outside jit
    except Exception:
        max_mult = None
    if max_mult is not None:
        assert max_mult <= 256.0, "edge multiplicity > 256: bf16 adjacency inexact"
    adj = adj_f32.astype(jnp.bfloat16)

    # one-hot graph assignment for global_add_pool: pool[g, i] = 1 iff batch[i]==g
    pool = jnp.zeros((g_pad, n_pad), jnp.float32).at[
        batch, jnp.arange(n)].set(1.0).astype(jnp.bfloat16)

    # node features padded to the uniform 128-lane width, bf16 MXU operand
    x_p = jnp.zeros((n_pad, h_pad), jnp.float32).at[
        :n, :features].set(x).astype(jnp.bfloat16)

    (fw1, fb1), (fw2, fb2), (fw3, fb3) = params["fc1"], params["fc2"], params["fc3"]
    out = _fused_gin_call(
        params["eps"], adj, x_p, pool,
        params["w1s"], params["b1s"], params["w2s"], params["b2s"],
        params["bn_scales"], params["bn_shifts"],
        fw1, fb1, fw2, fb2, fw3, fb3,
        num_classes=num_classes)
    return out[:num_graphs, :num_classes]


# ---------------------------------------------------------------------------
# Pure-JAX f32 reference (same bf16-quantized weights, f32 activations)
# ---------------------------------------------------------------------------

def gin_reference(params, x, edge_index, batch, num_graphs):
    n, features = x.shape
    h_pad = params["h_pad"]
    num_classes = params["num_classes"]
    num_layers = params["w1s"].shape[0]

    src, dst = edge_index[0], edge_index[1]
    adj = jnp.zeros((n, n), jnp.float32).at[dst, src].add(1.0)

    h = jnp.zeros((n, h_pad), jnp.float32).at[:, :features].set(x)
    eps = params["eps"]
    for l in range(num_layers):
        z = (1.0 + eps[l]) * h + adj @ h
        z = jnp.maximum(z @ params["w1s"][l].astype(jnp.float32)
                        + params["b1s"][l, 0], 0.0)
        z = jnp.maximum(z @ params["w2s"][l].astype(jnp.float32)
                        + params["b2s"][l, 0], 0.0)
        z = z * params["bn_scales"][l, 0] + params["bn_shifts"][l, 0]
        h = jnp.maximum(z, 0.0)
    pooled = jnp.zeros((num_graphs, h_pad), jnp.float32).at[batch].add(h)
    (fw1, fb1), (fw2, fb2), (fw3, fb3) = params["fc1"], params["fc2"], params["fc3"]
    a = jnp.maximum(pooled @ fw1.astype(jnp.float32) + fb1[0], 0.0)
    a = jnp.maximum(a @ fw2.astype(jnp.float32) + fb2[0], 0.0)
    logits = (a @ fw3.astype(jnp.float32) + fb3[0])[:, :num_classes]
    return jax.nn.log_softmax(logits, axis=-1)


# ---------------------------------------------------------------------------
# Demo
# ---------------------------------------------------------------------------

if __name__ == "__main__":
    # args: sc_features=8, hidden_dim=32, num_layers=3, num_classes=4, dropout=0.5
    FEATURES, HIDDEN, NUM_LAYERS, NUM_CLASSES = 8, 32, 3, 4
    NUM_NODES, NUM_GRAPHS = 16, 2

    key = jax.random.PRNGKey(0)
    key, kx, kp = jax.random.split(key, 3)

    # node features
    x = jax.random.normal(kx, (NUM_NODES, FEATURES), jnp.float32)

    # two graphs of 8 nodes each, bidirectional ring edges within each graph
    edges = []
    nodes_per_graph = NUM_NODES // NUM_GRAPHS
    for g in range(NUM_GRAPHS):
        base = g * nodes_per_graph
        for i in range(nodes_per_graph):
            a, b = base + i, base + (i + 1) % nodes_per_graph
            edges.append((a, b))
            edges.append((b, a))
    edge_index = jnp.array(edges, dtype=jnp.int32).T  # (2, E)
    batch = jnp.repeat(jnp.arange(NUM_GRAPHS, dtype=jnp.int32), nodes_per_graph)

    params = make_gin_params(kp, FEATURES, HIDDEN, NUM_LAYERS, NUM_CLASSES)

    out = gin_forward(params, x, edge_index, batch, NUM_GRAPHS)
    out = jax.block_until_ready(out)

    assert out.shape == (NUM_GRAPHS, NUM_CLASSES)
    # log_softmax rows should exp-sum to 1
    assert bool(jnp.allclose(jnp.sum(jnp.exp(out), axis=-1), 1.0, atol=1e-3))
    # bf16-matmul kernel vs f32 reference (same quantized weights): bf16-level tolerance
    ref = gin_reference(params, x, edge_index, batch, NUM_GRAPHS)
    assert bool(jnp.allclose(out, ref, atol=8e-2, rtol=8e-2)), (out, ref)
    print("KERNEL_OK")
</pallas_src>

<mosaic_0001>
module attributes {stable_mosaic.version = 11 : i64} {
  func.func @_gin_fused_kernel(%arg0: i32, %arg1: memref<3xf32, #tpu.memory_space<smem>>, %arg2: memref<128x128xbf16, #tpu.memory_space<vmem>>, %arg3: memref<128x128xbf16, #tpu.memory_space<vmem>>, %arg4: memref<8x128xbf16, #tpu.memory_space<vmem>>, %arg5: memref<3x128x128xbf16, #tpu.memory_space<vmem>>, %arg6: memref<3x1x128xf32, #tpu.memory_space<vmem>>, %arg7: memref<3x128x128xbf16, #tpu.memory_space<vmem>>, %arg8: memref<3x1x128xf32, #tpu.memory_space<vmem>>, %arg9: memref<3x1x128xf32, #tpu.memory_space<vmem>>, %arg10: memref<3x1x128xf32, #tpu.memory_space<vmem>>, %arg11: memref<128x128xbf16, #tpu.memory_space<vmem>>, %arg12: memref<1x128xf32, #tpu.memory_space<vmem>>, %arg13: memref<128x128xbf16, #tpu.memory_space<vmem>>, %arg14: memref<1x128xf32, #tpu.memory_space<vmem>>, %arg15: memref<128x128xbf16, #tpu.memory_space<vmem>>, %arg16: memref<1x128xf32, #tpu.memory_space<vmem>>, %arg17: memref<8x128xf32, #tpu.memory_space<vmem>>) attributes {dimension_semantics = [#tpu.dimension_semantics<arbitrary>], iteration_bounds = array<i64: 1>, scalar_prefetch = 1 : i64, scratch_operands = 0 : i64, tpu.core_type = #tpu.core_type<tc>, window_params = [{pipeline_mode = #tpu.pipeline_mode<synchronous>, transform_indices = @transform_0, window_bounds = array<i64: 128, 128>}, {pipeline_mode = #tpu.pipeline_mode<synchronous>, transform_indices = @transform_1, window_bounds = array<i64: 128, 128>}, {pipeline_mode = #tpu.pipeline_mode<synchronous>, transform_indices = @transform_2, window_bounds = array<i64: 8, 128>}, {pipeline_mode = #tpu.pipeline_mode<synchronous>, transform_indices = @transform_3, window_bounds = array<i64: 3, 128, 128>}, {pipeline_mode = #tpu.pipeline_mode<synchronous>, transform_indices = @transform_4, window_bounds = array<i64: 3, 1, 128>}, {pipeline_mode = #tpu.pipeline_mode<synchronous>, transform_indices = @transform_5, window_bounds = array<i64: 3, 128, 128>}, {pipeline_mode = #tpu.pipeline_mode<synchronous>, transform_indices = @transform_6, window_bounds = array<i64: 3, 1, 128>}, {pipeline_mode = #tpu.pipeline_mode<synchronous>, transform_indices = @transform_7, window_bounds = array<i64: 3, 1, 128>}, {pipeline_mode = #tpu.pipeline_mode<synchronous>, transform_indices = @transform_8, window_bounds = array<i64: 3, 1, 128>}, {pipeline_mode = #tpu.pipeline_mode<synchronous>, transform_indices = @transform_9, window_bounds = array<i64: 128, 128>}, {pipeline_mode = #tpu.pipeline_mode<synchronous>, transform_indices = @transform_10, window_bounds = array<i64: 1, 128>}, {pipeline_mode = #tpu.pipeline_mode<synchronous>, transform_indices = @transform_11, window_bounds = array<i64: 128, 128>}, {pipeline_mode = #tpu.pipeline_mode<synchronous>, transform_indices = @transform_12, window_bounds = array<i64: 1, 128>}, {pipeline_mode = #tpu.pipeline_mode<synchronous>, transform_indices = @transform_13, window_bounds = array<i64: 128, 128>}, {pipeline_mode = #tpu.pipeline_mode<synchronous>, transform_indices = @transform_14, window_bounds = array<i64: 1, 128>}, {pipeline_mode = #tpu.pipeline_mode<synchronous>, transform_indices = @transform_15, window_bounds = array<i64: 8, 128>}]} {
    %c0 = arith.constant 0 : index
    %c0_0 = arith.constant 0 : index
    %0 = vector.load %arg3[%c0, %c0_0] : memref<128x128xbf16, #tpu.memory_space<vmem>>, vector<128x128xbf16>
    %c0_1 = arith.constant 0 : index
    %c0_2 = arith.constant 0 : index
    %1 = vector.load %arg2[%c0_1, %c0_2] : memref<128x128xbf16, #tpu.memory_space<vmem>>, vector<128x128xbf16>
    %cst = arith.constant dense<0.000000e+00> : vector<128x128xf32>
    %2 = tpu.matmul %1, %0, %cst {dimension_numbers = #tpu.dot_dimension_numbers<[1], [0], [0], [1], [0, 0, 1, 1], [], []>} : vector<128x128xbf16>, vector<128x128xbf16>, vector<128x128xf32> -> vector<128x128xf32>
    %c0_3 = arith.constant 0 : index
    %3 = memref.load %arg1[%c0_3] : memref<3xf32, #tpu.memory_space<smem>>
    %cst_4 = arith.constant 1.000000e+00 : f32
    %4 = arith.addf %cst_4, %3 : f32
    %5 = arith.extf %0 : vector<128x128xbf16> to vector<128x128xf32>
    %6 = vector.broadcast %4 : f32 to vector<128x128xf32>
    %7 = arith.mulf %6, %5 : vector<128x128xf32>
    %8 = arith.addf %7, %2 : vector<128x128xf32>
    %9 = arith.truncf %8 : vector<128x128xf32> to vector<128x128xbf16>
    %c0_5 = arith.constant 0 : index
    %c0_6 = arith.constant 0 : index
    %c0_7 = arith.constant 0 : index
    %10 = vector.load %arg5[%c0_5, %c0_6, %c0_7] : memref<3x128x128xbf16, #tpu.memory_space<vmem>>, vector<1x128x128xbf16>
    %11 = vector.shape_cast %10 : vector<1x128x128xbf16> to vector<128x128xbf16>
    %cst_8 = arith.constant dense<0.000000e+00> : vector<128x128xf32>
    %12 = tpu.matmul %9, %11, %cst_8 {dimension_numbers = #tpu.dot_dimension_numbers<[1], [0], [0], [1], [0, 0, 1, 1], [], []>} : vector<128x128xbf16>, vector<128x128xbf16>, vector<128x128xf32> -> vector<128x128xf32>
    %c0_9 = arith.constant 0 : index
    %c0_10 = arith.constant 0 : index
    %c0_11 = arith.constant 0 : index
    %13 = vector.load %arg6[%c0_9, %c0_10, %c0_11] : memref<3x1x128xf32, #tpu.memory_space<vmem>>, vector<1x1x128xf32>
    %14 = vector.shape_cast %13 : vector<1x1x128xf32> to vector<1x128xf32>
    %15 = vector.broadcast %14 : vector<1x128xf32> to vector<128x128xf32>
    %16 = arith.addf %12, %15 : vector<128x128xf32>
    %cst_12 = arith.constant 0.000000e+00 : f32
    %17 = vector.broadcast %cst_12 : f32 to vector<128x128xf32>
    %18 = arith.maximumf %16, %17 : vector<128x128xf32>
    %19 = arith.truncf %18 : vector<128x128xf32> to vector<128x128xbf16>
    %c0_13 = arith.constant 0 : index
    %c0_14 = arith.constant 0 : index
    %c0_15 = arith.constant 0 : index
    %20 = vector.load %arg7[%c0_13, %c0_14, %c0_15] : memref<3x128x128xbf16, #tpu.memory_space<vmem>>, vector<1x128x128xbf16>
    %21 = vector.shape_cast %20 : vector<1x128x128xbf16> to vector<128x128xbf16>
    %cst_16 = arith.constant dense<0.000000e+00> : vector<128x128xf32>
    %22 = tpu.matmul %19, %21, %cst_16 {dimension_numbers = #tpu.dot_dimension_numbers<[1], [0], [0], [1], [0, 0, 1, 1], [], []>} : vector<128x128xbf16>, vector<128x128xbf16>, vector<128x128xf32> -> vector<128x128xf32>
    %c0_17 = arith.constant 0 : index
    %c0_18 = arith.constant 0 : index
    %c0_19 = arith.constant 0 : index
    %23 = vector.load %arg8[%c0_17, %c0_18, %c0_19] : memref<3x1x128xf32, #tpu.memory_space<vmem>>, vector<1x1x128xf32>
    %24 = vector.shape_cast %23 : vector<1x1x128xf32> to vector<1x128xf32>
    %25 = vector.broadcast %24 : vector<1x128xf32> to vector<128x128xf32>
    %26 = arith.addf %22, %25 : vector<128x128xf32>
    %cst_20 = arith.constant 0.000000e+00 : f32
    %27 = vector.broadcast %cst_20 : f32 to vector<128x128xf32>
    %28 = arith.maximumf %26, %27 : vector<128x128xf32>
    %c0_21 = arith.constant 0 : index
    %c0_22 = arith.constant 0 : index
    %c0_23 = arith.constant 0 : index
    %29 = vector.load %arg9[%c0_21, %c0_22, %c0_23] : memref<3x1x128xf32, #tpu.memory_space<vmem>>, vector<1x1x128xf32>
    %30 = vector.shape_cast %29 : vector<1x1x128xf32> to vector<1x128xf32>
    %31 = vector.broadcast %30 : vector<1x128xf32> to vector<128x128xf32>
    %32 = arith.mulf %28, %31 : vector<128x128xf32>
    %c0_24 = arith.constant 0 : index
    %c0_25 = arith.constant 0 : index
    %c0_26 = arith.constant 0 : index
    %33 = vector.load %arg10[%c0_24, %c0_25, %c0_26] : memref<3x1x128xf32, #tpu.memory_space<vmem>>, vector<1x1x128xf32>
    %34 = vector.shape_cast %33 : vector<1x1x128xf32> to vector<1x128xf32>
    %35 = vector.broadcast %34 : vector<1x128xf32> to vector<128x128xf32>
    %36 = arith.addf %32, %35 : vector<128x128xf32>
    %cst_27 = arith.constant 0.000000e+00 : f32
    %37 = vector.broadcast %cst_27 : f32 to vector<128x128xf32>
    %38 = arith.maximumf %36, %37 : vector<128x128xf32>
    %39 = arith.truncf %38 : vector<128x128xf32> to vector<128x128xbf16>
    %c0_28 = arith.constant 0 : index
    %c0_29 = arith.constant 0 : index
    %40 = vector.load %arg2[%c0_28, %c0_29] : memref<128x128xbf16, #tpu.memory_space<vmem>>, vector<128x128xbf16>
    %cst_30 = arith.constant dense<0.000000e+00> : vector<128x128xf32>
    %41 = tpu.matmul %40, %39, %cst_30 {dimension_numbers = #tpu.dot_dimension_numbers<[1], [0], [0], [1], [0, 0, 1, 1], [], []>} : vector<128x128xbf16>, vector<128x128xbf16>, vector<128x128xf32> -> vector<128x128xf32>
    %c1 = arith.constant 1 : index
    %42 = memref.load %arg1[%c1] : memref<3xf32, #tpu.memory_space<smem>>
    %cst_31 = arith.constant 1.000000e+00 : f32
    %43 = arith.addf %cst_31, %42 : f32
    %44 = arith.extf %39 : vector<128x128xbf16> to vector<128x128xf32>
    %45 = vector.broadcast %43 : f32 to vector<128x128xf32>
    %46 = arith.mulf %45, %44 : vector<128x128xf32>
    %47 = arith.addf %46, %41 : vector<128x128xf32>
    %48 = arith.truncf %47 : vector<128x128xf32> to vector<128x128xbf16>
    %c1_32 = arith.constant 1 : index
    %c0_33 = arith.constant 0 : index
    %c0_34 = arith.constant 0 : index
    %49 = vector.load %arg5[%c1_32, %c0_33, %c0_34] : memref<3x128x128xbf16, #tpu.memory_space<vmem>>, vector<1x128x128xbf16>
    %50 = vector.shape_cast %49 : vector<1x128x128xbf16> to vector<128x128xbf16>
    %cst_35 = arith.constant dense<0.000000e+00> : vector<128x128xf32>
    %51 = tpu.matmul %48, %50, %cst_35 {dimension_numbers = #tpu.dot_dimension_numbers<[1], [0], [0], [1], [0, 0, 1, 1], [], []>} : vector<128x128xbf16>, vector<128x128xbf16>, vector<128x128xf32> -> vector<128x128xf32>
    %c1_36 = arith.constant 1 : index
    %c0_37 = arith.constant 0 : index
    %c0_38 = arith.constant 0 : index
    %52 = vector.load %arg6[%c1_36, %c0_37, %c0_38] : memref<3x1x128xf32, #tpu.memory_space<vmem>>, vector<1x1x128xf32>
    %53 = vector.shape_cast %52 : vector<1x1x128xf32> to vector<1x128xf32>
    %54 = vector.broadcast %53 : vector<1x128xf32> to vector<128x128xf32>
    %55 = arith.addf %51, %54 : vector<128x128xf32>
    %cst_39 = arith.constant 0.000000e+00 : f32
    %56 = vector.broadcast %cst_39 : f32 to vector<128x128xf32>
    %57 = arith.maximumf %55, %56 : vector<128x128xf32>
    %58 = arith.truncf %57 : vector<128x128xf32> to vector<128x128xbf16>
    %c1_40 = arith.constant 1 : index
    %c0_41 = arith.constant 0 : index
    %c0_42 = arith.constant 0 : index
    %59 = vector.load %arg7[%c1_40, %c0_41, %c0_42] : memref<3x128x128xbf16, #tpu.memory_space<vmem>>, vector<1x128x128xbf16>
    %60 = vector.shape_cast %59 : vector<1x128x128xbf16> to vector<128x128xbf16>
    %cst_43 = arith.constant dense<0.000000e+00> : vector<128x128xf32>
    %61 = tpu.matmul %58, %60, %cst_43 {dimension_numbers = #tpu.dot_dimension_numbers<[1], [0], [0], [1], [0, 0, 1, 1], [], []>} : vector<128x128xbf16>, vector<128x128xbf16>, vector<128x128xf32> -> vector<128x128xf32>
    %c1_44 = arith.constant 1 : index
    %c0_45 = arith.constant 0 : index
    %c0_46 = arith.constant 0 : index
    %62 = vector.load %arg8[%c1_44, %c0_45, %c0_46] : memref<3x1x128xf32, #tpu.memory_space<vmem>>, vector<1x1x128xf32>
    %63 = vector.shape_cast %62 : vector<1x1x128xf32> to vector<1x128xf32>
    %64 = vector.broadcast %63 : vector<1x128xf32> to vector<128x128xf32>
    %65 = arith.addf %61, %64 : vector<128x128xf32>
    %cst_47 = arith.constant 0.000000e+00 : f32
    %66 = vector.broadcast %cst_47 : f32 to vector<128x128xf32>
    %67 = arith.maximumf %65, %66 : vector<128x128xf32>
    %c1_48 = arith.constant 1 : index
    %c0_49 = arith.constant 0 : index
    %c0_50 = arith.constant 0 : index
    %68 = vector.load %arg9[%c1_48, %c0_49, %c0_50] : memref<3x1x128xf32, #tpu.memory_space<vmem>>, vector<1x1x128xf32>
    %69 = vector.shape_cast %68 : vector<1x1x128xf32> to vector<1x128xf32>
    %70 = vector.broadcast %69 : vector<1x128xf32> to vector<128x128xf32>
    %71 = arith.mulf %67, %70 : vector<128x128xf32>
    %c1_51 = arith.constant 1 : index
    %c0_52 = arith.constant 0 : index
    %c0_53 = arith.constant 0 : index
    %72 = vector.load %arg10[%c1_51, %c0_52, %c0_53] : memref<3x1x128xf32, #tpu.memory_space<vmem>>, vector<1x1x128xf32>
    %73 = vector.shape_cast %72 : vector<1x1x128xf32> to vector<1x128xf32>
    %74 = vector.broadcast %73 : vector<1x128xf32> to vector<128x128xf32>
    %75 = arith.addf %71, %74 : vector<128x128xf32>
    %cst_54 = arith.constant 0.000000e+00 : f32
    %76 = vector.broadcast %cst_54 : f32 to vector<128x128xf32>
    %77 = arith.maximumf %75, %76 : vector<128x128xf32>
    %78 = arith.truncf %77 : vector<128x128xf32> to vector<128x128xbf16>
    %c0_55 = arith.constant 0 : index
    %c0_56 = arith.constant 0 : index
    %79 = vector.load %arg2[%c0_55, %c0_56] : memref<128x128xbf16, #tpu.memory_space<vmem>>, vector<128x128xbf16>
    %cst_57 = arith.constant dense<0.000000e+00> : vector<128x128xf32>
    %80 = tpu.matmul %79, %78, %cst_57 {dimension_numbers = #tpu.dot_dimension_numbers<[1], [0], [0], [1], [0, 0, 1, 1], [], []>} : vector<128x128xbf16>, vector<128x128xbf16>, vector<128x128xf32> -> vector<128x128xf32>
    %c2 = arith.constant 2 : index
    %81 = memref.load %arg1[%c2] : memref<3xf32, #tpu.memory_space<smem>>
    %cst_58 = arith.constant 1.000000e+00 : f32
    %82 = arith.addf %cst_58, %81 : f32
    %83 = arith.extf %78 : vector<128x128xbf16> to vector<128x128xf32>
    %84 = vector.broadcast %82 : f32 to vector<128x128xf32>
    %85 = arith.mulf %84, %83 : vector<128x128xf32>
    %86 = arith.addf %85, %80 : vector<128x128xf32>
    %87 = arith.truncf %86 : vector<128x128xf32> to vector<128x128xbf16>
    %c2_59 = arith.constant 2 : index
    %c0_60 = arith.constant 0 : index
    %c0_61 = arith.constant 0 : index
    %88 = vector.load %arg5[%c2_59, %c0_60, %c0_61] : memref<3x128x128xbf16, #tpu.memory_space<vmem>>, vector<1x128x128xbf16>
    %89 = vector.shape_cast %88 : vector<1x128x128xbf16> to vector<128x128xbf16>
    %cst_62 = arith.constant dense<0.000000e+00> : vector<128x128xf32>
    %90 = tpu.matmul %87, %89, %cst_62 {dimension_numbers = #tpu.dot_dimension_numbers<[1], [0], [0], [1], [0, 0, 1, 1], [], []>} : vector<128x128xbf16>, vector<128x128xbf16>, vector<128x128xf32> -> vector<128x128xf32>
    %c2_63 = arith.constant 2 : index
    %c0_64 = arith.constant 0 : index
    %c0_65 = arith.constant 0 : index
    %91 = vector.load %arg6[%c2_63, %c0_64, %c0_65] : memref<3x1x128xf32, #tpu.memory_space<vmem>>, vector<1x1x128xf32>
    %92 = vector.shape_cast %91 : vector<1x1x128xf32> to vector<1x128xf32>
    %93 = vector.broadcast %92 : vector<1x128xf32> to vector<128x128xf32>
    %94 = arith.addf %90, %93 : vector<128x128xf32>
    %cst_66 = arith.constant 0.000000e+00 : f32
    %95 = vector.broadcast %cst_66 : f32 to vector<128x128xf32>
    %96 = arith.maximumf %94, %95 : vector<128x128xf32>
    %97 = arith.truncf %96 : vector<128x128xf32> to vector<128x128xbf16>
    %c2_67 = arith.constant 2 : index
    %c0_68 = arith.constant 0 : index
    %c0_69 = arith.constant 0 : index
    %98 = vector.load %arg7[%c2_67, %c0_68, %c0_69] : memref<3x128x128xbf16, #tpu.memory_space<vmem>>, vector<1x128x128xbf16>
    %99 = vector.shape_cast %98 : vector<1x128x128xbf16> to vector<128x128xbf16>
    %cst_70 = arith.constant dense<0.000000e+00> : vector<128x128xf32>
    %100 = tpu.matmul %97, %99, %cst_70 {dimension_numbers = #tpu.dot_dimension_numbers<[1], [0], [0], [1], [0, 0, 1, 1], [], []>} : vector<128x128xbf16>, vector<128x128xbf16>, vector<128x128xf32> -> vector<128x128xf32>
    %c2_71 = arith.constant 2 : index
    %c0_72 = arith.constant 0 : index
    %c0_73 = arith.constant 0 : index
    %101 = vector.load %arg8[%c2_71, %c0_72, %c0_73] : memref<3x1x128xf32, #tpu.memory_space<vmem>>, vector<1x1x128xf32>
    %102 = vector.shape_cast %101 : vector<1x1x128xf32> to vector<1x128xf32>
    %103 = vector.broadcast %102 : vector<1x128xf32> to vector<128x128xf32>
    %104 = arith.addf %100, %103 : vector<128x128xf32>
    %cst_74 = arith.constant 0.000000e+00 : f32
    %105 = vector.broadcast %cst_74 : f32 to vector<128x128xf32>
    %106 = arith.maximumf %104, %105 : vector<128x128xf32>
    %c2_75 = arith.constant 2 : index
    %c0_76 = arith.constant 0 : index
    %c0_77 = arith.constant 0 : index
    %107 = vector.load %arg9[%c2_75, %c0_76, %c0_77] : memref<3x1x128xf32, #tpu.memory_space<vmem>>, vector<1x1x128xf32>
    %108 = vector.shape_cast %107 : vector<1x1x128xf32> to vector<1x128xf32>
    %109 = vector.broadcast %108 : vector<1x128xf32> to vector<128x128xf32>
    %110 = arith.mulf %106, %109 : vector<128x128xf32>
    %c2_78 = arith.constant 2 : index
    %c0_79 = arith.constant 0 : index
    %c0_80 = arith.constant 0 : index
    %111 = vector.load %arg10[%c2_78, %c0_79, %c0_80] : memref<3x1x128xf32, #tpu.memory_space<vmem>>, vector<1x1x128xf32>
    %112 = vector.shape_cast %111 : vector<1x1x128xf32> to vector<1x128xf32>
    %113 = vector.broadcast %112 : vector<1x128xf32> to vector<128x128xf32>
    %114 = arith.addf %110, %113 : vector<128x128xf32>
    %cst_81 = arith.constant 0.000000e+00 : f32
    %115 = vector.broadcast %cst_81 : f32 to vector<128x128xf32>
    %116 = arith.maximumf %114, %115 : vector<128x128xf32>
    %117 = arith.truncf %116 : vector<128x128xf32> to vector<128x128xbf16>
    %c0_82 = arith.constant 0 : index
    %c0_83 = arith.constant 0 : index
    %118 = vector.load %arg4[%c0_82, %c0_83] : memref<8x128xbf16, #tpu.memory_space<vmem>>, vector<8x128xbf16>
    %cst_84 = arith.constant dense<0.000000e+00> : vector<8x128xf32>
    %119 = tpu.matmul %118, %117, %cst_84 {dimension_numbers = #tpu.dot_dimension_numbers<[1], [0], [0], [1], [0, 0, 1, 1], [], []>} : vector<8x128xbf16>, vector<128x128xbf16>, vector<8x128xf32> -> vector<8x128xf32>
    %120 = arith.truncf %119 : vector<8x128xf32> to vector<8x128xbf16>
    %c0_85 = arith.constant 0 : index
    %c0_86 = arith.constant 0 : index
    %121 = vector.load %arg11[%c0_85, %c0_86] : memref<128x128xbf16, #tpu.memory_space<vmem>>, vector<128x128xbf16>
    %cst_87 = arith.constant dense<0.000000e+00> : vector<8x128xf32>
    %122 = tpu.matmul %120, %121, %cst_87 {dimension_numbers = #tpu.dot_dimension_numbers<[1], [0], [0], [1], [0, 0, 1, 1], [], []>} : vector<8x128xbf16>, vector<128x128xbf16>, vector<8x128xf32> -> vector<8x128xf32>
    %c0_88 = arith.constant 0 : index
    %c0_89 = arith.constant 0 : index
    %123 = vector.load %arg12[%c0_88, %c0_89] : memref<1x128xf32, #tpu.memory_space<vmem>>, vector<1x128xf32>
    %124 = vector.broadcast %123 : vector<1x128xf32> to vector<8x128xf32>
    %125 = arith.addf %122, %124 : vector<8x128xf32>
    %cst_90 = arith.constant 0.000000e+00 : f32
    %126 = vector.broadcast %cst_90 : f32 to vector<8x128xf32>
    %127 = arith.maximumf %125, %126 : vector<8x128xf32>
    %128 = arith.truncf %127 : vector<8x128xf32> to vector<8x128xbf16>
    %c0_91 = arith.constant 0 : index
    %c0_92 = arith.constant 0 : index
    %129 = vector.load %arg13[%c0_91, %c0_92] : memref<128x128xbf16, #tpu.memory_space<vmem>>, vector<128x128xbf16>
    %cst_93 = arith.constant dense<0.000000e+00> : vector<8x128xf32>
    %130 = tpu.matmul %128, %129, %cst_93 {dimension_numbers = #tpu.dot_dimension_numbers<[1], [0], [0], [1], [0, 0, 1, 1], [], []>} : vector<8x128xbf16>, vector<128x128xbf16>, vector<8x128xf32> -> vector<8x128xf32>
    %c0_94 = arith.constant 0 : index
    %c0_95 = arith.constant 0 : index
    %131 = vector.load %arg14[%c0_94, %c0_95] : memref<1x128xf32, #tpu.memory_space<vmem>>, vector<1x128xf32>
    %132 = vector.broadcast %131 : vector<1x128xf32> to vector<8x128xf32>
    %133 = arith.addf %130, %132 : vector<8x128xf32>
    %cst_96 = arith.constant 0.000000e+00 : f32
    %134 = vector.broadcast %cst_96 : f32 to vector<8x128xf32>
    %135 = arith.maximumf %133, %134 : vector<8x128xf32>
    %136 = arith.truncf %135 : vector<8x128xf32> to vector<8x128xbf16>
    %c0_97 = arith.constant 0 : index
    %c0_98 = arith.constant 0 : index
    %137 = vector.load %arg15[%c0_97, %c0_98] : memref<128x128xbf16, #tpu.memory_space<vmem>>, vector<128x128xbf16>
    %cst_99 = arith.constant dense<0.000000e+00> : vector<8x128xf32>
    %138 = tpu.matmul %136, %137, %cst_99 {dimension_numbers = #tpu.dot_dimension_numbers<[1], [0], [0], [1], [0, 0, 1, 1], [], []>} : vector<8x128xbf16>, vector<128x128xbf16>, vector<8x128xf32> -> vector<8x128xf32>
    %c0_100 = arith.constant 0 : index
    %c0_101 = arith.constant 0 : index
    %139 = vector.load %arg16[%c0_100, %c0_101] : memref<1x128xf32, #tpu.memory_space<vmem>>, vector<1x128xf32>
    %140 = vector.broadcast %139 : vector<1x128xf32> to vector<8x128xf32>
    %141 = arith.addf %138, %140 : vector<8x128xf32>
    %142 = tpu.iota {dimensions = array<i32: 1>} : vector<8x128xi32>
    %c4_i32 = arith.constant 4 : i32
    %143 = vector.broadcast %c4_i32 : i32 to vector<8x128xi32>
    %144 = arith.cmpi slt, %142, %143 : vector<8x128xi32>
    %cst_102 = arith.constant -1.000000e+30 : f32
    %145 = vector.broadcast %cst_102 : f32 to vector<8x128xf32>
    %146 = arith.select %144, %141, %145 : vector<8x128xi1>, vector<8x128xf32>
    %cst_103 = arith.constant dense<0xFF800000> : vector<8xf32>
    %147 = vector.multi_reduction <maximumf>, %146, %cst_103 [1] : vector<8x128xf32> to vector<8xf32>
    %148 = vector.shape_cast %147 : vector<8xf32> to vector<8x1xf32>
    %149 = vector.broadcast %148 : vector<8x1xf32> to vector<8x128xf32>
    %150 = arith.subf %146, %149 : vector<8x128xf32>
    %151 = math.exp %150 : vector<8x128xf32>
    %cst_104 = arith.constant 0.000000e+00 : f32
    %152 = vector.broadcast %cst_104 : f32 to vector<8x128xf32>
    %153 = arith.select %144, %151, %152 : vector<8x128xi1>, vector<8x128xf32>
    %cst_105 = arith.constant dense<0.000000e+00> : vector<8xf32>
    %154 = vector.multi_reduction <add>, %153, %cst_105 [1] : vector<8x128xf32> to vector<8xf32>
    %155 = vector.shape_cast %154 : vector<8xf32> to vector<8x1xf32>
    %156 = math.log %155 : vector<8x1xf32>
    %157 = vector.broadcast %156 : vector<8x1xf32> to vector<8x128xf32>
    %158 = arith.subf %150, %157 : vector<8x128xf32>
    %c0_106 = arith.constant 0 : index
    %c0_107 = arith.constant 0 : index
    %159 = vector.load %arg17[%c0_106, %c0_107] : memref<8x128xf32, #tpu.memory_space<vmem>>, vector<8x128xf32>
    tpu.vector_store %arg17[%c0_106, %c0_107], %158 {strides = array<i32>} : memref<8x128xf32, #tpu.memory_space<vmem>>, vector<8x128xf32>,
    return
  }
  func.func @transform_0(%arg0: i32, %arg1: memref<3xf32, #tpu.memory_space<smem>>) -> (i32, i32) {
    %c0_i32 = arith.constant 0 : i32
    %c0_i32_0 = arith.constant 0 : i32
    %c0_i32_1 = arith.constant 0 : i32
    return %c0_i32, %c0_i32_0 : i32, i32
  }
  func.func @transform_1(%arg0: i32, %arg1: memref<3xf32, #tpu.memory_space<smem>>) -> (i32, i32) {
    %c0_i32 = arith.constant 0 : i32
    %c0_i32_0 = arith.constant 0 : i32
    %c0_i32_1 = arith.constant 0 : i32
    return %c0_i32, %c0_i32_0 : i32, i32
  }
  func.func @transform_2(%arg0: i32, %arg1: memref<3xf32, #tpu.memory_space<smem>>) -> (i32, i32) {
    %c0_i32 = arith.constant 0 : i32
    %c0_i32_0 = arith.constant 0 : i32
    %c0_i32_1 = arith.constant 0 : i32
    return %c0_i32, %c0_i32_0 : i32, i32
  }
  func.func @transform_3(%arg0: i32, %arg1: memref<3xf32, #tpu.memory_space<smem>>) -> (i32, i32, i32) {
    %c0_i32 = arith.constant 0 : i32
    %c0_i32_0 = arith.constant 0 : i32
    %c0_i32_1 = arith.constant 0 : i32
    %c0_i32_2 = arith.constant 0 : i32
    return %c0_i32, %c0_i32_0, %c0_i32_1 : i32, i32, i32
  }
  func.func @transform_4(%arg0: i32, %arg1: memref<3xf32, #tpu.memory_space<smem>>) -> (i32, i32, i32) {
    %c0_i32 = arith.constant 0 : i32
    %c0_i32_0 = arith.constant 0 : i32
    %c0_i32_1 = arith.constant 0 : i32
    %c0_i32_2 = arith.constant 0 : i32
    return %c0_i32, %c0_i32_0, %c0_i32_1 : i32, i32, i32
  }
  func.func @transform_5(%arg0: i32, %arg1: memref<3xf32, #tpu.memory_space<smem>>) -> (i32, i32, i32) {
    %c0_i32 = arith.constant 0 : i32
    %c0_i32_0 = arith.constant 0 : i32
    %c0_i32_1 = arith.constant 0 : i32
    %c0_i32_2 = arith.constant 0 : i32
    return %c0_i32, %c0_i32_0, %c0_i32_1 : i32, i32, i32
  }
  func.func @transform_6(%arg0: i32, %arg1: memref<3xf32, #tpu.memory_space<smem>>) -> (i32, i32, i32) {
    %c0_i32 = arith.constant 0 : i32
    %c0_i32_0 = arith.constant 0 : i32
    %c0_i32_1 = arith.constant 0 : i32
    %c0_i32_2 = arith.constant 0 : i32
    return %c0_i32, %c0_i32_0, %c0_i32_1 : i32, i32, i32
  }
  func.func @transform_7(%arg0: i32, %arg1: memref<3xf32, #tpu.memory_space<smem>>) -> (i32, i32, i32) {
    %c0_i32 = arith.constant 0 : i32
    %c0_i32_0 = arith.constant 0 : i32
    %c0_i32_1 = arith.constant 0 : i32
    %c0_i32_2 = arith.constant 0 : i32
    return %c0_i32, %c0_i32_0, %c0_i32_1 : i32, i32, i32
  }
  func.func @transform_8(%arg0: i32, %arg1: memref<3xf32, #tpu.memory_space<smem>>) -> (i32, i32, i32) {
    %c0_i32 = arith.constant 0 : i32
    %c0_i32_0 = arith.constant 0 : i32
    %c0_i32_1 = arith.constant 0 : i32
    %c0_i32_2 = arith.constant 0 : i32
    return %c0_i32, %c0_i32_0, %c0_i32_1 : i32, i32, i32
  }
  func.func @transform_9(%arg0: i32, %arg1: memref<3xf32, #tpu.memory_space<smem>>) -> (i32, i32) {
    %c0_i32 = arith.constant 0 : i32
    %c0_i32_0 = arith.constant 0 : i32
    %c0_i32_1 = arith.constant 0 : i32
    return %c0_i32, %c0_i32_0 : i32, i32
  }
  func.func @transform_10(%arg0: i32, %arg1: memref<3xf32, #tpu.memory_space<smem>>) -> (i32, i32) {
    %c0_i32 = arith.constant 0 : i32
    %c0_i32_0 = arith.constant 0 : i32
    %c0_i32_1 = arith.constant 0 : i32
    return %c0_i32, %c0_i32_0 : i32, i32
  }
  func.func @transform_11(%arg0: i32, %arg1: memref<3xf32, #tpu.memory_space<smem>>) -> (i32, i32) {
    %c0_i32 = arith.constant 0 : i32
    %c0_i32_0 = arith.constant 0 : i32
    %c0_i32_1 = arith.constant 0 : i32
    return %c0_i32, %c0_i32_0 : i32, i32
  }
  func.func @transform_12(%arg0: i32, %arg1: memref<3xf32, #tpu.memory_space<smem>>) -> (i32, i32) {
    %c0_i32 = arith.constant 0 : i32
    %c0_i32_0 = arith.constant 0 : i32
    %c0_i32_1 = arith.constant 0 : i32
    return %c0_i32, %c0_i32_0 : i32, i32
  }
  func.func @transform_13(%arg0: i32, %arg1: memref<3xf32, #tpu.memory_space<smem>>) -> (i32, i32) {
    %c0_i32 = arith.constant 0 : i32
    %c0_i32_0 = arith.constant 0 : i32
    %c0_i32_1 = arith.constant 0 : i32
    return %c0_i32, %c0_i32_0 : i32, i32
  }
  func.func @transform_14(%arg0: i32, %arg1: memref<3xf32, #tpu.memory_space<smem>>) -> (i32, i32) {
    %c0_i32 = arith.constant 0 : i32
    %c0_i32_0 = arith.constant 0 : i32
    %c0_i32_1 = arith.constant 0 : i32
    return %c0_i32, %c0_i32_0 : i32, i32
  }
  func.func @transform_15(%arg0: i32, %arg1: memref<3xf32, #tpu.memory_space<smem>>) -> (i32, i32) {
    %c0_i32 = arith.constant 0 : i32
    %c0_i32_0 = arith.constant 0 : i32
    %c0_i32_1 = arith.constant 0 : i32
    return %c0_i32, %c0_i32_0 : i32, i32
  }
}

</mosaic_0001>

<llo_original>
// kernel: tpu_custom_call.1
$region0: #{tpu_custom_call.1}
  #allocation0 [shape = 'u32[]', space=smem, size = 0x4, offset = 0x4, fixed_abs, tag = 'smem constant byte address 0x4 - core index']
  #allocation1 [shape = 'u32[72,128]{1,0:T(1,128)}', space=vmem, size = 0x9000, scoped, tag = 'internal scratch']
  #allocation2 [shape = 's32[1]{0}', space=sflag, size = 0x4, scoped, tag = 'scoped memory for tpu_custom_call.1']
  #allocation3 [shape = 'u8[512]{0}', space=smem, size = 0x200, scoped, tag = 'prefetched SMEM operand 0']
  %s0 = inlined_call_operand.hbm [shape: f32[3], index: 0, kind: input, shape index: {}]
  %s1 = inlined_call_operand.hbm [shape: bf16[128,128], index: 1, kind: input, shape index: {}]
  %s2 = inlined_call_operand.hbm [shape: bf16[128,128], index: 2, kind: input, shape index: {}]
  %s3 = inlined_call_operand.hbm [shape: bf16[8,128], index: 3, kind: input, shape index: {}]
  %s4 = inlined_call_operand.hbm [shape: bf16[3,128,128], index: 4, kind: input, shape index: {}]
  %s5 = inlined_call_operand.vmem [shape: f32[3,1,128], index: 5, kind: input, shape index: {}]
  %s6 = inlined_call_operand.hbm [shape: bf16[3,128,128], index: 6, kind: input, shape index: {}]
  %s7 = inlined_call_operand.vmem [shape: f32[3,1,128], index: 7, kind: input, shape index: {}]
  %s8 = inlined_call_operand.hbm [shape: f32[3,1,128], index: 8, kind: input, shape index: {}]
  %s9 = inlined_call_operand.hbm [shape: f32[3,1,128], index: 9, kind: input, shape index: {}]
  %s10 = inlined_call_operand.hbm [shape: bf16[128,128], index: 10, kind: input, shape index: {}]
  %s11 = inlined_call_operand.vmem [shape: f32[1,128], index: 11, kind: input, shape index: {}]
  %s12 = inlined_call_operand.hbm [shape: bf16[128,128], index: 12, kind: input, shape index: {}]
  %s13 = inlined_call_operand.vmem [shape: f32[1,128], index: 13, kind: input, shape index: {}]
  %s14 = inlined_call_operand.hbm [shape: bf16[128,128], index: 14, kind: input, shape index: {}]
  %s15 = inlined_call_operand.vmem [shape: f32[1,128], index: 15, kind: input, shape index: {}]
  %s16 = inlined_call_operand.hbm [shape: f32[8,128], index: 16, kind: output, shape index: {}]
  %s17 = sld [smem:[#allocation0]]
  $region110: #{tpu_custom_call.1} parent=0
    _
  %s19 = ssub.s32 1, %s17
  %s20 = scalar_select 0, %s19, %s17
  %s22 = sshll.u32 %s0, 4
  %s23 = int_to_ptr.hbm [resolvable:$true] %s22
  %25 = dma.hbm_to_smem %s23, 16, [#allocation3], [#allocation2]
  %27 = dma.done [#allocation2], 16
  %28 = sfence
  $region1: #{tpu_custom_call.1} parent=0
    #allocation4 [shape = 'u8[32768]{0}', space=vmem, size = 0x8000, scoped, tag = 'input window, operand 1, single buffered']
    #allocation5 [shape = 's32[1]{0}', space=sflag, size = 0x4, scoped, tag = 'scoped memory for tpu_custom_call.1']
    #allocation6 [shape = 's32[1]{0}', space=sflag, size = 0x4, scoped, tag = 'scoped memory for tpu_custom_call.1']
    #allocation7 [shape = 'u8[32768]{0}', space=vmem, size = 0x8000, scoped, tag = 'input window, operand 2, single buffered']
    #allocation8 [shape = 's32[1]{0}', space=sflag, size = 0x4, scoped, tag = 'scoped memory for tpu_custom_call.1']
    #allocation9 [shape = 'u8[2048]{0}', space=vmem, size = 0x800, scoped, tag = 'input window, operand 3, single buffered']
    #allocation10 [shape = 'u8[98304]{0}', space=vmem, size = 0x18000, scoped, tag = 'input window, operand 4, single buffered']
    #allocation11 [shape = 's32[1]{0}', space=sflag, size = 0x4, scoped, tag = 'scoped memory for tpu_custom_call.1']
    #allocation12 [shape = 'u8[98304]{0}', space=vmem, size = 0x18000, scoped, tag = 'input window, operand 6, single buffered']
    #allocation13 [shape = 'u8[1536]{0}', space=vmem, size = 0x800, scoped, tag = 'input window, operand 8, single buffered']
    #allocation14 [shape = 's32[1]{0}', space=sflag, size = 0x4, scoped, tag = 'scoped memory for tpu_custom_call.1']
    #allocation15 [shape = 'u8[1536]{0}', space=vmem, size = 0x800, scoped, tag = 'input window, operand 9, single buffered']
    #allocation16 [shape = 'u8[32768]{0}', space=vmem, size = 0x8000, scoped, tag = 'input window, operand 10, single buffered']
    #allocation17 [shape = 's32[1]{0}', space=sflag, size = 0x4, scoped, tag = 'scoped memory for tpu_custom_call.1']
    #allocation18 [shape = 'u8[32768]{0}', space=vmem, size = 0x8000, scoped, tag = 'input window, operand 12, single buffered']
    #allocation19 [shape = 'u8[32768]{0}', space=vmem, size = 0x8000, scoped, tag = 'input window, operand 14, single buffered']
    #allocation20 [shape = 's32[1]{0}', space=sflag, size = 0x4, scoped, tag = 'scoped memory for tpu_custom_call.1']
    #allocation21 [shape = 'u8[4096]{0}', space=vmem, size = 0x1000, scoped, tag = 'output window, operand 0, single buffered']
    %29 = vsyncpa [#allocation5], 0
    %30 = vsyncpa [#allocation8], 0
    %31 = vsyncpa [#allocation11], 0
    %32 = vsyncpa [#allocation14], 0
    %33 = vsyncpa [#allocation17], 0
    %34 = vsyncpa [#allocation20], 0
    %35 = vsyncpa [#allocation6], 0
    // Predicated region
    $region2: #{tpu_custom_call.1} parent=1 // pred_check
      _
    $region3: #{tpu_custom_call.1} parent=1 // pred_check_branch
      %37 = sbr.rel (0) target = $region5
    $region4: #{tpu_custom_call.1} parent=1 // pred_region
      %39 = vsyncadd [#allocation5], 0
      %s40 = sshll.u32 %s1, 4
      %s41 = int_to_ptr.hbm [resolvable:$true] %s40
      %s42 = sshll.u32 [#allocation4], 4
      %s43 = int_to_ptr.vmem [resolvable:$true] %s42
      %48 = dma.hbm_to_vmem [thread:$0]  %s41, 1024, %s43, [#allocation5], 64, 64, 4
    $region5: #{tpu_custom_call.1} parent=1 // pred_fallthru
      _
    // Predicated region
    $region6: #{tpu_custom_call.1} parent=1 // pred_check
      _
    $region7: #{tpu_custom_call.1} parent=1 // pred_check_branch
      %50 = sbr.rel (0) target = $region9
    $region8: #{tpu_custom_call.1} parent=1 // pred_region
      %52 = vsyncadd [#allocation8], 0
      %s53 = sshll.u32 %s2, 4
      %s54 = int_to_ptr.hbm [resolvable:$true] %s53
      %s55 = sshll.u32 [#allocation7], 4
      %s56 = int_to_ptr.vmem [resolvable:$true] %s55
      %61 = dma.hbm_to_vmem [thread:$0]  %s54, 1024, %s56, [#allocation8], 64, 64, 4
    $region9: #{tpu_custom_call.1} parent=1 // pred_fallthru
      _
    // Predicated region
    $region10: #{tpu_custom_call.1} parent=1 // pred_check
      _
    $region11: #{tpu_custom_call.1} parent=1 // pred_check_branch
      %63 = sbr.rel (0) target = $region13
    $region12: #{tpu_custom_call.1} parent=1 // pred_region
      %65 = vsyncadd [#allocation8], 0
      %s67 = sshll.u32 %s3, 4
      %s68 = int_to_ptr.hbm [resolvable:$true] %s67
      %s69 = sshll.u32 [#allocation9], 4
      %s70 = int_to_ptr.vmem [resolvable:$true] %s69
      %72 = dma.hbm_to_vmem [thread:$0]  %s68, 64, %s70, [#allocation8]
    $region13: #{tpu_custom_call.1} parent=1 // pred_fallthru
      _
    // Predicated region
    $region14: #{tpu_custom_call.1} parent=1 // pred_check
      _
    $region15: #{tpu_custom_call.1} parent=1 // pred_check_branch
      %74 = sbr.rel (0) target = $region17
    $region16: #{tpu_custom_call.1} parent=1 // pred_region
      %76 = vsyncadd [#allocation11], 0
      %s77 = sshll.u32 %s4, 4
      %s78 = int_to_ptr.hbm [resolvable:$true] %s77
      %s79 = sshll.u32 [#allocation10], 4
      %s80 = int_to_ptr.vmem [resolvable:$true] %s79
      %85 = dma.hbm_to_vmem [thread:$0]  %s78, 3072, %s80, [#allocation11], 64, 64, 4
    $region17: #{tpu_custom_call.1} parent=1 // pred_fallthru
      _
    // Predicated region
    $region18: #{tpu_custom_call.1} parent=1 // pred_check
      _
    $region19: #{tpu_custom_call.1} parent=1 // pred_check_branch
      %87 = sbr.rel (0) target = $region21
    $region20: #{tpu_custom_call.1} parent=1 // pred_region
      _
    $region21: #{tpu_custom_call.1} parent=1 // pred_fallthru
      _
    // Predicated region
    $region22: #{tpu_custom_call.1} parent=1 // pred_check
      _
    $region23: #{tpu_custom_call.1} parent=1 // pred_check_branch
      %89 = sbr.rel (0) target = $region25
    $region24: #{tpu_custom_call.1} parent=1 // pred_region
      %91 = vsyncadd [#allocation11], 0
      %s92 = sshll.u32 %s6, 4
      %s93 = int_to_ptr.hbm [resolvable:$true] %s92
      %s94 = sshll.u32 [#allocation12], 4
      %s95 = int_to_ptr.vmem [resolvable:$true] %s94
      %100 = dma.hbm_to_vmem [thread:$0]  %s93, 3072, %s95, [#allocation11], 64, 64, 4
    $region25: #{tpu_custom_call.1} parent=1 // pred_fallthru
      _
    // Predicated region
    $region26: #{tpu_custom_call.1} parent=1 // pred_check
      _
    $region27: #{tpu_custom_call.1} parent=1 // pred_check_branch
      %102 = sbr.rel (0) target = $region29
    $region28: #{tpu_custom_call.1} parent=1 // pred_region
      _
    $region29: #{tpu_custom_call.1} parent=1 // pred_fallthru
      _
    // Predicated region
    $region30: #{tpu_custom_call.1} parent=1 // pred_check
      _
    $region31: #{tpu_custom_call.1} parent=1 // pred_check_branch
      %104 = sbr.rel (0) target = $region33
    $region32: #{tpu_custom_call.1} parent=1 // pred_region
      %106 = vsyncadd [#allocation14], 0
      %s107 = sshll.u32 %s8, 4
      %s108 = int_to_ptr.hbm [resolvable:$true] %s107
      %s109 = sshll.u32 [#allocation13], 4
      %s110 = int_to_ptr.vmem [resolvable:$true] %s109
      %115 = dma.hbm_to_vmem [thread:$0]  %s108, 48, %s110, [#allocation14], 16, 16, 1
    $region33: #{tpu_custom_call.1} parent=1 // pred_fallthru
      _
    // Predicated region
    $region34: #{tpu_custom_call.1} parent=1 // pred_check
      _
    $region35: #{tpu_custom_call.1} parent=1 // pred_check_branch
      %117 = sbr.rel (0) target = $region37
    $region36: #{tpu_custom_call.1} parent=1 // pred_region
      %119 = vsyncadd [#allocation14], 0
      %s120 = sshll.u32 %s9, 4
      %s121 = int_to_ptr.hbm [resolvable:$true] %s120
      %s122 = sshll.u32 [#allocation15], 4
      %s123 = int_to_ptr.vmem [resolvable:$true] %s122
      %128 = dma.hbm_to_vmem [thread:$0]  %s121, 48, %s123, [#allocation14], 16, 16, 1
    $region37: #{tpu_custom_call.1} parent=1 // pred_fallthru
      _
    // Predicated region
    $region38: #{tpu_custom_call.1} parent=1 // pred_check
      _
    $region39: #{tpu_custom_call.1} parent=1 // pred_check_branch
      %130 = sbr.rel (0) target = $region41
    $region40: #{tpu_custom_call.1} parent=1 // pred_region
      %132 = vsyncadd [#allocation17], 0
      %s133 = sshll.u32 %s10, 4
      %s134 = int_to_ptr.hbm [resolvable:$true] %s133
      %s135 = sshll.u32 [#allocation16], 4
      %s136 = int_to_ptr.vmem [resolvable:$true] %s135
      %141 = dma.hbm_to_vmem [thread:$0]  %s134, 1024, %s136, [#allocation17], 64, 64, 4
    $region41: #{tpu_custom_call.1} parent=1 // pred_fallthru
      _
    // Predicated region
    $region42: #{tpu_custom_call.1} parent=1 // pred_check
      _
    $region43: #{tpu_custom_call.1} parent=1 // pred_check_branch
      %143 = sbr.rel (0) target = $region45
    $region44: #{tpu_custom_call.1} parent=1 // pred_region
      _
    $region45: #{tpu_custom_call.1} parent=1 // pred_fallthru
      _
    // Predicated region
    $region46: #{tpu_custom_call.1} parent=1 // pred_check
      _
    $region47: #{tpu_custom_call.1} parent=1 // pred_check_branch
      %145 = sbr.rel (0) target = $region49
    $region48: #{tpu_custom_call.1} parent=1 // pred_region
      %147 = vsyncadd [#allocation17], 0
      %s148 = sshll.u32 %s12, 4
      %s149 = int_to_ptr.hbm [resolvable:$true] %s148
      %s150 = sshll.u32 [#allocation18], 4
      %s151 = int_to_ptr.vmem [resolvable:$true] %s150
      %156 = dma.hbm_to_vmem [thread:$0]  %s149, 1024, %s151, [#allocation17], 64, 64, 4
    $region49: #{tpu_custom_call.1} parent=1 // pred_fallthru
      _
    // Predicated region
    $region50: #{tpu_custom_call.1} parent=1 // pred_check
      _
    $region51: #{tpu_custom_call.1} parent=1 // pred_check_branch
      %158 = sbr.rel (0) target = $region53
    $region52: #{tpu_custom_call.1} parent=1 // pred_region
      _
    $region53: #{tpu_custom_call.1} parent=1 // pred_fallthru
      _
    // Predicated region
    $region54: #{tpu_custom_call.1} parent=1 // pred_check
      _
    $region55: #{tpu_custom_call.1} parent=1 // pred_check_branch
      %160 = sbr.rel (0) target = $region57
    $region56: #{tpu_custom_call.1} parent=1 // pred_region
      %162 = vsyncadd [#allocation20], 0
      %s163 = sshll.u32 %s14, 4
      %s164 = int_to_ptr.hbm [resolvable:$true] %s163
      %s165 = sshll.u32 [#allocation19], 4
      %s166 = int_to_ptr.vmem [resolvable:$true] %s165
      %171 = dma.hbm_to_vmem [thread:$0]  %s164, 1024, %s166, [#allocation20], 64, 64, 4
    $region57: #{tpu_custom_call.1} parent=1 // pred_fallthru
      _
    // Predicated region
    $region58: #{tpu_custom_call.1} parent=1 // pred_check
      _
    $region59: #{tpu_custom_call.1} parent=1 // pred_check_branch
      %173 = sbr.rel (0) target = $region61
    $region60: #{tpu_custom_call.1} parent=1 // pred_region
      _
    $region61: #{tpu_custom_call.1} parent=1 // pred_fallthru
      _
    // Predicated region
    $region62: #{tpu_custom_call.1} parent=1 // pred_check
      _
    $region63: #{tpu_custom_call.1} parent=1 // pred_check_branch
      %175 = sbr.rel (0) target = $region65
    $region64: #{tpu_custom_call.1} parent=1 // pred_region
      %177 = dma.done [#allocation5], 1024
    $region65: #{tpu_custom_call.1} parent=1 // pred_fallthru
      _
    // Predicated region
    $region66: #{tpu_custom_call.1} parent=1 // pred_check
      _
    $region67: #{tpu_custom_call.1} parent=1 // pred_check_branch
      %179 = sbr.rel (0) target = $region69
    $region68: #{tpu_custom_call.1} parent=1 // pred_region
      %181 = dma.done [#allocation8], 1024
    $region69: #{tpu_custom_call.1} parent=1 // pred_fallthru
      _
    // Predicated region
    $region70: #{tpu_custom_call.1} parent=1 // pred_check
      _
    $region71: #{tpu_custom_call.1} parent=1 // pred_check_branch
      %183 = sbr.rel (0) target = $region73
    $region72: #{tpu_custom_call.1} parent=1 // pred_region
      %185 = dma.done [#allocation8], 64
    $region73: #{tpu_custom_call.1} parent=1 // pred_fallthru
      _
    // Predicated region
    $region74: #{tpu_custom_call.1} parent=1 // pred_check
      _
    $region75: #{tpu_custom_call.1} parent=1 // pred_check_branch
      %187 = sbr.rel (0) target = $region77
    $region76: #{tpu_custom_call.1} parent=1 // pred_region
      %189 = dma.done [#allocation11], 3072
    $region77: #{tpu_custom_call.1} parent=1 // pred_fallthru
      _
    // Predicated region
    $region78: #{tpu_custom_call.1} parent=1 // pred_check
      _
    $region79: #{tpu_custom_call.1} parent=1 // pred_check_branch
      %191 = sbr.rel (0) target = $region81
    $region80: #{tpu_custom_call.1} parent=1 // pred_region
      %193 = dma.done [#allocation11], 3072
    $region81: #{tpu_custom_call.1} parent=1 // pred_fallthru
      _
    // Predicated region
    $region82: #{tpu_custom_call.1} parent=1 // pred_check
      _
    $region83: #{tpu_custom_call.1} parent=1 // pred_check_branch
      %195 = sbr.rel (0) target = $region85
    $region84: #{tpu_custom_call.1} parent=1 // pred_region
      %197 = dma.done [#allocation14], 48
    $region85: #{tpu_custom_call.1} parent=1 // pred_fallthru
      _
    // Predicated region
    $region86: #{tpu_custom_call.1} parent=1 // pred_check
      _
    $region87: #{tpu_custom_call.1} parent=1 // pred_check_branch
      %199 = sbr.rel (0) target = $region89
    $region88: #{tpu_custom_call.1} parent=1 // pred_region
      %201 = dma.done [#allocation14], 48
    $region89: #{tpu_custom_call.1} parent=1 // pred_fallthru
      _
    // Predicated region
    $region90: #{tpu_custom_call.1} parent=1 // pred_check
      _
    $region91: #{tpu_custom_call.1} parent=1 // pred_check_branch
      %203 = sbr.rel (0) target = $region93
    $region92: #{tpu_custom_call.1} parent=1 // pred_region
      %205 = dma.done [#allocation17], 1024
    $region93: #{tpu_custom_call.1} parent=1 // pred_fallthru
      _
    // Predicated region
    $region94: #{tpu_custom_call.1} parent=1 // pred_check
      _
    $region95: #{tpu_custom_call.1} parent=1 // pred_check_branch
      %207 = sbr.rel (0) target = $region97
    $region96: #{tpu_custom_call.1} parent=1 // pred_region
      %209 = dma.done [#allocation17], 1024
    $region97: #{tpu_custom_call.1} parent=1 // pred_fallthru
      _
    // Predicated region
    $region98: #{tpu_custom_call.1} parent=1 // pred_check
      _
    $region99: #{tpu_custom_call.1} parent=1 // pred_check_branch
      %211 = sbr.rel (0) target = $region101
    $region100: #{tpu_custom_call.1} parent=1 // pred_region
      %213 = dma.done [#allocation20], 1024
    $region101: #{tpu_custom_call.1} parent=1 // pred_fallthru
      _
    %v214 = vld [vmem:[#allocation7] sm:$0xf]
    %v215 = vld [vmem:[#allocation7 + $0x4] sm:$0xf]
    %v216 = vld [vmem:[#allocation7 + $0x8] sm:$0xf]
    %v217 = vld [vmem:[#allocation7 + $0xc] sm:$0xf]
    %v218 = vld [vmem:[#allocation7 + $0x10] sm:$0xf]
    %v219 = vld [vmem:[#allocation7 + $0x14] sm:$0xf]
    %v220 = vld [vmem:[#allocation7 + $0x18] sm:$0xf]
    %v221 = vld [vmem:[#allocation7 + $0x1c] sm:$0xf]
    %v222 = vld [vmem:[#allocation7 + $0x20] sm:$0xf]
    %v223 = vld [vmem:[#allocation7 + $0x24] sm:$0xf]
    %v224 = vld [vmem:[#allocation7 + $0x28] sm:$0xf]
    %v225 = vld [vmem:[#allocation7 + $0x2c] sm:$0xf]
    %v226 = vld [vmem:[#allocation7 + $0x30] sm:$0xf]
    %v227 = vld [vmem:[#allocation7 + $0x34] sm:$0xf]
    %v228 = vld [vmem:[#allocation7 + $0x38] sm:$0xf]
    %v229 = vld [vmem:[#allocation7 + $0x3c] sm:$0xf]
    %v230 = vld [vmem:[#allocation4] sm:$0xf]
    %v231 = vld [vmem:[#allocation4 + $0x4] sm:$0xf]
    %v232 = vld [vmem:[#allocation4 + $0x8] sm:$0xf]
    %v233 = vld [vmem:[#allocation4 + $0xc] sm:$0xf]
    %v234 = vld [vmem:[#allocation4 + $0x10] sm:$0xf]
    %v235 = vld [vmem:[#allocation4 + $0x14] sm:$0xf]
    %v236 = vld [vmem:[#allocation4 + $0x18] sm:$0xf]
    %v237 = vld [vmem:[#allocation4 + $0x1c] sm:$0xf]
    %v238 = vld [vmem:[#allocation4 + $0x20] sm:$0xf]
    %v239 = vld [vmem:[#allocation4 + $0x24] sm:$0xf]
    %v240 = vld [vmem:[#allocation4 + $0x28] sm:$0xf]
    %v241 = vld [vmem:[#allocation4 + $0x2c] sm:$0xf]
    %v242 = vld [vmem:[#allocation4 + $0x30] sm:$0xf]
    %v243 = vld [vmem:[#allocation4 + $0x34] sm:$0xf]
    %v244 = vld [vmem:[#allocation4 + $0x38] sm:$0xf]
    %v245 = vld [vmem:[#allocation4 + $0x3c] sm:$0xf]
    %v262 = vunpack.c.l.b16 %v230
    %v263 = vunpack.c.l.b16 %v231
    %v264 = vunpack.c.l.b16 %v232
    %v265 = vunpack.c.l.b16 %v233
    %v266 = vunpack.c.l.b16 %v234
    %v267 = vunpack.c.l.b16 %v235
    %v268 = vunpack.c.l.b16 %v236
    %v269 = vunpack.c.l.b16 %v237
    %v270 = vunpack.c.l.b16 %v238
    %v271 = vunpack.c.l.b16 %v239
    %v272 = vunpack.c.l.b16 %v240
    %v273 = vunpack.c.l.b16 %v241
    %v274 = vunpack.c.l.b16 %v242
    %v275 = vunpack.c.l.b16 %v243
    %v276 = vunpack.c.l.b16 %v244
    %v277 = vunpack.c.l.b16 %v245
    %v278 = vpack.c.b16 %v263, %v262
    %v279 = vpack.c.b16 %v265, %v264
    %v280 = vpack.c.b16 %v267, %v266
    %v281 = vpack.c.b16 %v269, %v268
    %v282 = vpack.c.b16 %v271, %v270
    %v283 = vpack.c.b16 %v273, %v272
    %v284 = vpack.c.b16 %v275, %v274
    %v285 = vpack.c.b16 %v277, %v276
    %v310 = vunpack.c.l.b16 %v214
    %v311 = vunpack.c.l.b16 %v215
    %v312 = vunpack.c.l.b16 %v216
    %v313 = vunpack.c.l.b16 %v217
    %v314 = vunpack.c.l.b16 %v218
    %v315 = vunpack.c.l.b16 %v219
    %v316 = vunpack.c.l.b16 %v220
    %v317 = vunpack.c.l.b16 %v221
    %v318 = vunpack.c.l.b16 %v222
    %v319 = vunpack.c.l.b16 %v223
    %v320 = vunpack.c.l.b16 %v224
    %v321 = vunpack.c.l.b16 %v225
    %v322 = vunpack.c.l.b16 %v226
    %v323 = vunpack.c.l.b16 %v227
    %v324 = vunpack.c.l.b16 %v228
    %v325 = vunpack.c.l.b16 %v229
    %v326 = vpack.c.b16 %v311, %v310
    %v327 = vpack.c.b16 %v313, %v312
    %v328 = vpack.c.b16 %v315, %v314
    %v329 = vpack.c.b16 %v317, %v316
    %v330 = vpack.c.b16 %v319, %v318
    %v331 = vpack.c.b16 %v321, %v320
    %v332 = vpack.c.b16 %v323, %v322
    %v333 = vpack.c.b16 %v325, %v324
    %342 = vmatpush.bf16.msra.mxu0 %v333
    %343 = vmatpush.bf16.msra.mxu0 %v332
    %344 = vmatpush.bf16.msra.mxu0 %v331
    %345 = vmatpush.bf16.msra.mxu0 %v330
    %346 = vmatpush.bf16.msra.mxu0 %v329
    %347 = vmatpush.bf16.msra.mxu0 %v328
    %348 = vmatpush.bf16.msra.mxu0 %v327
    %349 = vmatpush.bf16.msra.mxu0 %v326
    %350 = vmatmul.bf16.gmra.mxu0 %v278
    %v351 = vpop.f32.mrf.mxu0
    %v352 = vadd.f32 0.0, %v351
    %v353 = vpop.f32.mrf.mxu0
    %v354 = vadd.f32 0.0, %v353
    %355 = vmatmul.bf16.gmra.mxu0 %v279
    %v356 = vpop.f32.mrf.mxu0
    %v357 = vadd.f32 0.0, %v356
    %v358 = vpop.f32.mrf.mxu0
    %v359 = vadd.f32 0.0, %v358
    %360 = vmatmul.bf16.gmra.mxu0 %v280
    %v361 = vpop.f32.mrf.mxu0
    %v362 = vadd.f32 0.0, %v361
    %v363 = vpop.f32.mrf.mxu0
    %v364 = vadd.f32 0.0, %v363
    %365 = vmatmul.bf16.gmra.mxu0 %v281
    %v366 = vpop.f32.mrf.mxu0
    %v367 = vadd.f32 0.0, %v366
    %v368 = vpop.f32.mrf.mxu0
    %v369 = vadd.f32 0.0, %v368
    %370 = vmatmul.bf16.gmra.mxu0 %v282
    %v371 = vpop.f32.mrf.mxu0
    %v372 = vadd.f32 0.0, %v371
    %v373 = vpop.f32.mrf.mxu0
    %v374 = vadd.f32 0.0, %v373
    %375 = vmatmul.bf16.gmra.mxu0 %v283
    %v376 = vpop.f32.mrf.mxu0
    %v377 = vadd.f32 0.0, %v376
    %v378 = vpop.f32.mrf.mxu0
    %v379 = vadd.f32 0.0, %v378
    %380 = vmatmul.bf16.gmra.mxu0 %v284
    %v381 = vpop.f32.mrf.mxu0
    %v382 = vadd.f32 0.0, %v381
    %v383 = vpop.f32.mrf.mxu0
    %v384 = vadd.f32 0.0, %v383
    %385 = vmatmul.bf16.gmra.mxu0 %v285
    %v386 = vpop.f32.mrf.mxu0
    %v387 = vadd.f32 0.0, %v386
    %v388 = vpop.f32.mrf.mxu0
    %v389 = vadd.f32 0.0, %v388
    %390 = vdwg.mxu0
    %s391 = sld [smem:[#allocation3]]
    %s392 = sadd.f32 %s391, 1.0
    %v393 = vunpack.c.l.bf16 %v214
    %v394 = vunpack.c.l.bf16 %v215
    %v395 = vunpack.c.l.bf16 %v216
    %v396 = vunpack.c.l.bf16 %v217
    %v397 = vunpack.c.l.bf16 %v218
    %v398 = vunpack.c.l.bf16 %v219
    %v399 = vunpack.c.l.bf16 %v220
    %v400 = vunpack.c.l.bf16 %v221
    %v401 = vunpack.c.l.bf16 %v222
    %v402 = vunpack.c.l.bf16 %v223
    %v403 = vunpack.c.l.bf16 %v224
    %v404 = vunpack.c.l.bf16 %v225
    %v405 = vunpack.c.l.bf16 %v226
    %v406 = vunpack.c.l.bf16 %v227
    %v407 = vunpack.c.l.bf16 %v228
    %v408 = vunpack.c.l.bf16 %v229
    %v409 = vstv %s392
    %v410 = vmul.f32 %v409, %v393
    %v411 = vmul.f32 %v409, %v394
    %v412 = vmul.f32 %v409, %v395
    %v413 = vmul.f32 %v409, %v396
    %v414 = vmul.f32 %v409, %v397
    %v415 = vmul.f32 %v409, %v398
    %v416 = vmul.f32 %v409, %v399
    %v417 = vmul.f32 %v409, %v400
    %v418 = vmul.f32 %v409, %v401
    %v419 = vmul.f32 %v409, %v402
    %v420 = vmul.f32 %v409, %v403
    %v421 = vmul.f32 %v409, %v404
    %v422 = vmul.f32 %v409, %v405
    %v423 = vmul.f32 %v409, %v406
    %v424 = vmul.f32 %v409, %v407
    %v425 = vmul.f32 %v409, %v408
    %v426 = vadd.f32 %v410, %v352
    %v427 = vadd.f32 %v411, %v354
    %v428 = vadd.f32 %v412, %v357
    %v429 = vadd.f32 %v413, %v359
    %v430 = vadd.f32 %v414, %v362
    %v431 = vadd.f32 %v415, %v364
    %v432 = vadd.f32 %v416, %v367
    %v433 = vadd.f32 %v417, %v369
    %v434 = vadd.f32 %v418, %v372
    %v435 = vadd.f32 %v419, %v374
    %v436 = vadd.f32 %v420, %v377
    %v437 = vadd.f32 %v421, %v379
    %v438 = vadd.f32 %v422, %v382
    %v439 = vadd.f32 %v423, %v384
    %v440 = vadd.f32 %v424, %v387
    %v441 = vadd.f32 %v425, %v389
    %v442 = vpack.c.bf16 %v427, %v426
    %v443 = vpack.c.bf16 %v429, %v428
    %v444 = vpack.c.bf16 %v431, %v430
    %v445 = vpack.c.bf16 %v433, %v432
    %v446 = vpack.c.bf16 %v435, %v434
    %v447 = vpack.c.bf16 %v437, %v436
    %v448 = vpack.c.bf16 %v439, %v438
    %v449 = vpack.c.bf16 %v441, %v440
    %v450 = vld [vmem:[#allocation10] sm:$0xf]
    %v451 = vld [vmem:[#allocation10 + $0x4] sm:$0xf]
    %v452 = vld [vmem:[#allocation10 + $0x8] sm:$0xf]
    %v453 = vld [vmem:[#allocation10 + $0xc] sm:$0xf]
    %v454 = vld [vmem:[#allocation10 + $0x10] sm:$0xf]
    %v455 = vld [vmem:[#allocation10 + $0x14] sm:$0xf]
    %v456 = vld [vmem:[#allocation10 + $0x18] sm:$0xf]
    %v457 = vld [vmem:[#allocation10 + $0x1c] sm:$0xf]
    %v458 = vld [vmem:[#allocation10 + $0x20] sm:$0xf]
    %v459 = vld [vmem:[#allocation10 + $0x24] sm:$0xf]
    %v460 = vld [vmem:[#allocation10 + $0x28] sm:$0xf]
    %v461 = vld [vmem:[#allocation10 + $0x2c] sm:$0xf]
    %v462 = vld [vmem:[#allocation10 + $0x30] sm:$0xf]
    %v463 = vld [vmem:[#allocation10 + $0x34] sm:$0xf]
    %v464 = vld [vmem:[#allocation10 + $0x38] sm:$0xf]
    %v465 = vld [vmem:[#allocation10 + $0x3c] sm:$0xf]
    %v466 = vld [vmem:[%s5] sm:$0x1]
    %v468 = vperm.slane %v466, 0
    %v486 = vunpack.c.l.b16 %v450
    %v487 = vunpack.c.l.b16 %v451
    %v488 = vunpack.c.l.b16 %v452
    %v489 = vunpack.c.l.b16 %v453
    %v490 = vunpack.c.l.b16 %v454
    %v491 = vunpack.c.l.b16 %v455
    %v492 = vunpack.c.l.b16 %v456
    %v493 = vunpack.c.l.b16 %v457
    %v494 = vunpack.c.l.b16 %v458
    %v495 = vunpack.c.l.b16 %v459
    %v496 = vunpack.c.l.b16 %v460
    %v497 = vunpack.c.l.b16 %v461
    %v498 = vunpack.c.l.b16 %v462
    %v499 = vunpack.c.l.b16 %v463
    %v500 = vunpack.c.l.b16 %v464
    %v501 = vunpack.c.l.b16 %v465
    %v502 = vpack.c.b16 %v487, %v486
    %v503 = vpack.c.b16 %v489, %v488
    %v504 = vpack.c.b16 %v491, %v490
    %v505 = vpack.c.b16 %v493, %v492
    %v506 = vpack.c.b16 %v495, %v494
    %v507 = vpack.c.b16 %v497, %v496
    %v508 = vpack.c.b16 %v499, %v498
    %v509 = vpack.c.b16 %v501, %v500
    %518 = vmatpush.bf16.msra.mxu0 %v509
    %519 = vmatpush.bf16.msra.mxu0 %v508
    %520 = vmatpush.bf16.msra.mxu0 %v507
    %521 = vmatpush.bf16.msra.mxu0 %v506
    %522 = vmatpush.bf16.msra.mxu0 %v505
    %523 = vmatpush.bf16.msra.mxu0 %v504
    %524 = vmatpush.bf16.msra.mxu0 %v503
    %525 = vmatpush.bf16.msra.mxu0 %v502
    %526 = vmatmul.bf16.gmra.mxu0 %v442
    %v527 = vpop.f32.mrf.mxu0
    %v528 = vadd.f32 %v468, %v527
    %v529 = vpop.f32.mrf.mxu0
    %v530 = vadd.f32 %v468, %v529
    %531 = vmatmul.bf16.gmra.mxu0 %v443
    %v532 = vpop.f32.mrf.mxu0
    %v533 = vadd.f32 %v468, %v532
    %v534 = vpop.f32.mrf.mxu0
    %v535 = vadd.f32 %v468, %v534
    %536 = vmatmul.bf16.gmra.mxu0 %v444
    %v537 = vpop.f32.mrf.mxu0
    %v538 = vadd.f32 %v468, %v537
    %v539 = vpop.f32.mrf.mxu0
    %v540 = vadd.f32 %v468, %v539
    %541 = vmatmul.bf16.gmra.mxu0 %v445
    %v542 = vpop.f32.mrf.mxu0
    %v543 = vadd.f32 %v468, %v542
    %v544 = vpop.f32.mrf.mxu0
    %v545 = vadd.f32 %v468, %v544
    %546 = vmatmul.bf16.gmra.mxu0 %v446
    %v547 = vpop.f32.mrf.mxu0
    %v548 = vadd.f32 %v468, %v547
    %v549 = vpop.f32.mrf.mxu0
    %v550 = vadd.f32 %v468, %v549
    %551 = vmatmul.bf16.gmra.mxu0 %v447
    %v552 = vpop.f32.mrf.mxu0
    %v553 = vadd.f32 %v468, %v552
    %v554 = vpop.f32.mrf.mxu0
    %v555 = vadd.f32 %v468, %v554
    %556 = vmatmul.bf16.gmra.mxu0 %v448
    %v557 = vpop.f32.mrf.mxu0
    %v558 = vadd.f32 %v468, %v557
    %v559 = vpop.f32.mrf.mxu0
    %v560 = vadd.f32 %v468, %v559
    %561 = vmatmul.bf16.gmra.mxu0 %v449
    %v562 = vpop.f32.mrf.mxu0
    %v563 = vadd.f32 %v468, %v562
    %v564 = vpop.f32.mrf.mxu0
    %v565 = vadd.f32 %v468, %v564
    %566 = vdwg.mxu0
    %v567 = vmax.f32 %v528, 0.0
    %v568 = vmax.f32 %v530, 0.0
    %v569 = vmax.f32 %v533, 0.0
    %v570 = vmax.f32 %v535, 0.0
    %v571 = vmax.f32 %v538, 0.0
    %v572 = vmax.f32 %v540, 0.0
    %v573 = vmax.f32 %v543, 0.0
    %v574 = vmax.f32 %v545, 0.0
    %v575 = vmax.f32 %v548, 0.0
    %v576 = vmax.f32 %v550, 0.0
    %v577 = vmax.f32 %v553, 0.0
    %v578 = vmax.f32 %v555, 0.0
    %v579 = vmax.f32 %v558, 0.0
    %v580 = vmax.f32 %v560, 0.0
    %v581 = vmax.f32 %v563, 0.0
    %v582 = vmax.f32 %v565, 0.0
    %v583 = vpack.c.bf16 %v568, %v567
    %v584 = vpack.c.bf16 %v570, %v569
    %v585 = vpack.c.bf16 %v572, %v571
    %v586 = vpack.c.bf16 %v574, %v573
    %v587 = vpack.c.bf16 %v576, %v575
    %v588 = vpack.c.bf16 %v578, %v577
    %v589 = vpack.c.bf16 %v580, %v579
    %v590 = vpack.c.bf16 %v582, %v581
    %v591 = vld [vmem:[#allocation12] sm:$0xf]
    %v592 = vld [vmem:[#allocation12 + $0x4] sm:$0xf]
    %v593 = vld [vmem:[#allocation12 + $0x8] sm:$0xf]
    %v594 = vld [vmem:[#allocation12 + $0xc] sm:$0xf]
    %v595 = vld [vmem:[#allocation12 + $0x10] sm:$0xf]
    %v596 = vld [vmem:[#allocation12 + $0x14] sm:$0xf]
    %v597 = vld [vmem:[#allocation12 + $0x18] sm:$0xf]
    %v598 = vld [vmem:[#allocation12 + $0x1c] sm:$0xf]
    %v599 = vld [vmem:[#allocation12 + $0x20] sm:$0xf]
    %v600 = vld [vmem:[#allocation12 + $0x24] sm:$0xf]
    %v601 = vld [vmem:[#allocation12 + $0x28] sm:$0xf]
    %v602 = vld [vmem:[#allocation12 + $0x2c] sm:$0xf]
    %v603 = vld [vmem:[#allocation12 + $0x30] sm:$0xf]
    %v604 = vld [vmem:[#allocation12 + $0x34] sm:$0xf]
    %v605 = vld [vmem:[#allocation12 + $0x38] sm:$0xf]
    %v606 = vld [vmem:[#allocation12 + $0x3c] sm:$0xf]
    %v607 = vld [vmem:[%s7] sm:$0x1]
    %v609 = vperm.slane %v607, 0
    %v627 = vunpack.c.l.b16 %v591
    %v628 = vunpack.c.l.b16 %v592
    %v629 = vunpack.c.l.b16 %v593
    %v630 = vunpack.c.l.b16 %v594
    %v631 = vunpack.c.l.b16 %v595
    %v632 = vunpack.c.l.b16 %v596
    %v633 = vunpack.c.l.b16 %v597
    %v634 = vunpack.c.l.b16 %v598
    %v635 = vunpack.c.l.b16 %v599
    %v636 = vunpack.c.l.b16 %v600
    %v637 = vunpack.c.l.b16 %v601
    %v638 = vunpack.c.l.b16 %v602
    %v639 = vunpack.c.l.b16 %v603
    %v640 = vunpack.c.l.b16 %v604
    %v641 = vunpack.c.l.b16 %v605
    %v642 = vunpack.c.l.b16 %v606
    %v643 = vpack.c.b16 %v628, %v627
    %v644 = vpack.c.b16 %v630, %v629
    %v645 = vpack.c.b16 %v632, %v631
    %v646 = vpack.c.b16 %v634, %v633
    %v647 = vpack.c.b16 %v636, %v635
    %v648 = vpack.c.b16 %v638, %v637
    %v649 = vpack.c.b16 %v640, %v639
    %v650 = vpack.c.b16 %v642, %v641
    %659 = vmatpush.bf16.msra.mxu0 %v650
    %660 = vmatpush.bf16.msra.mxu0 %v649
    %661 = vmatpush.bf16.msra.mxu0 %v648
    %662 = vmatpush.bf16.msra.mxu0 %v647
    %663 = vmatpush.bf16.msra.mxu0 %v646
    %664 = vmatpush.bf16.msra.mxu0 %v645
    %665 = vmatpush.bf16.msra.mxu0 %v644
    %666 = vmatpush.bf16.msra.mxu0 %v643
    %667 = vmatmul.bf16.gmra.mxu0 %v583
    %v668 = vpop.f32.mrf.mxu0
    %v669 = vadd.f32 %v609, %v668
    %v670 = vpop.f32.mrf.mxu0
    %v671 = vadd.f32 %v609, %v670
    %672 = vmatmul.bf16.gmra.mxu0 %v584
    %v673 = vpop.f32.mrf.mxu0
    %v674 = vadd.f32 %v609, %v673
    %v675 = vpop.f32.mrf.mxu0
    %v676 = vadd.f32 %v609, %v675
    %677 = vmatmul.bf16.gmra.mxu0 %v585
    %v678 = vpop.f32.mrf.mxu0
    %v679 = vadd.f32 %v609, %v678
    %v680 = vpop.f32.mrf.mxu0
    %v681 = vadd.f32 %v609, %v680
    %682 = vmatmul.bf16.gmra.mxu0 %v586
    %v683 = vpop.f32.mrf.mxu0
    %v684 = vadd.f32 %v609, %v683
    %v685 = vpop.f32.mrf.mxu0
    %v686 = vadd.f32 %v609, %v685
    %687 = vmatmul.bf16.gmra.mxu0 %v587
    %v688 = vpop.f32.mrf.mxu0
    %v689 = vadd.f32 %v609, %v688
    %v690 = vpop.f32.mrf.mxu0
    %v691 = vadd.f32 %v609, %v690
    %692 = vmatmul.bf16.gmra.mxu0 %v588
    %v693 = vpop.f32.mrf.mxu0
    %v694 = vadd.f32 %v609, %v693
    %v695 = vpop.f32.mrf.mxu0
    %v696 = vadd.f32 %v609, %v695
    %697 = vmatmul.bf16.gmra.mxu0 %v589
    %v698 = vpop.f32.mrf.mxu0
    %v699 = vadd.f32 %v609, %v698
    %v700 = vpop.f32.mrf.mxu0
    %v701 = vadd.f32 %v609, %v700
    %702 = vmatmul.bf16.gmra.mxu0 %v590
    %v703 = vpop.f32.mrf.mxu0
    %v704 = vadd.f32 %v609, %v703
    %v705 = vpop.f32.mrf.mxu0
    %v706 = vadd.f32 %v609, %v705
    %707 = vdwg.mxu0
    %v708 = vmax.f32 %v669, 0.0
    %v709 = vmax.f32 %v671, 0.0
    %v710 = vmax.f32 %v674, 0.0
    %v711 = vmax.f32 %v676, 0.0
    %v712 = vmax.f32 %v679, 0.0
    %v713 = vmax.f32 %v681, 0.0
    %v714 = vmax.f32 %v684, 0.0
    %v715 = vmax.f32 %v686, 0.0
    %v716 = vmax.f32 %v689, 0.0
    %v717 = vmax.f32 %v691, 0.0
    %v718 = vmax.f32 %v694, 0.0
    %v719 = vmax.f32 %v696, 0.0
    %v720 = vmax.f32 %v699, 0.0
    %v721 = vmax.f32 %v701, 0.0
    %v722 = vmax.f32 %v704, 0.0
    %v723 = vmax.f32 %v706, 0.0
    %v724 = vld [vmem:[#allocation13] sm:$0x1]
    %v726 = vperm.slane %v724, 0
    %v728 = vmul.f32 %v708, %v726
    %v729 = vmul.f32 %v709, %v726
    %v730 = vmul.f32 %v710, %v726
    %v731 = vmul.f32 %v711, %v726
    %v732 = vmul.f32 %v712, %v726
    %v733 = vmul.f32 %v713, %v726
    %v734 = vmul.f32 %v714, %v726
    %v735 = vmul.f32 %v715, %v726
    %v736 = vmul.f32 %v716, %v726
    %v737 = vmul.f32 %v717, %v726
    %v738 = vmul.f32 %v718, %v726
    %v739 = vmul.f32 %v719, %v726
    %v740 = vmul.f32 %v720, %v726
    %v741 = vmul.f32 %v721, %v726
    %v742 = vmul.f32 %v722, %v726
    %v743 = vmul.f32 %v723, %v726
    %v744 = vld [vmem:[#allocation15] sm:$0x1]
    %v746 = vperm.slane %v744, 0
    %v748 = vadd.f32 %v728, %v746
    %v749 = vadd.f32 %v729, %v746
    %v750 = vadd.f32 %v730, %v746
    %v751 = vadd.f32 %v731, %v746
    %v752 = vadd.f32 %v732, %v746
    %v753 = vadd.f32 %v733, %v746
    %v754 = vadd.f32 %v734, %v746
    %v755 = vadd.f32 %v735, %v746
    %v756 = vadd.f32 %v736, %v746
    %v757 = vadd.f32 %v737, %v746
    %v758 = vadd.f32 %v738, %v746
    %v759 = vadd.f32 %v739, %v746
    %v760 = vadd.f32 %v740, %v746
    %v761 = vadd.f32 %v741, %v746
    %v762 = vadd.f32 %v742, %v746
    %v763 = vadd.f32 %v743, %v746
    %v764 = vmax.f32 %v748, 0.0
    %v765 = vmax.f32 %v749, 0.0
    %v766 = vmax.f32 %v750, 0.0
    %v767 = vmax.f32 %v751, 0.0
    %v768 = vmax.f32 %v752, 0.0
    %v769 = vmax.f32 %v753, 0.0
    %v770 = vmax.f32 %v754, 0.0
    %v771 = vmax.f32 %v755, 0.0
    %v772 = vmax.f32 %v756, 0.0
    %v773 = vmax.f32 %v757, 0.0
    %v774 = vmax.f32 %v758, 0.0
    %v775 = vmax.f32 %v759, 0.0
    %v776 = vmax.f32 %v760, 0.0
    %v777 = vmax.f32 %v761, 0.0
    %v778 = vmax.f32 %v762, 0.0
    %v779 = vmax.f32 %v763, 0.0
    %v780 = vpack.c.bf16 %v764, %v764
    %v781 = vpack.c.bf16 %v765, %v765
    %v782 = vpack.c.bf16 %v766, %v766
    %v783 = vpack.c.bf16 %v767, %v767
    %v784 = vpack.c.bf16 %v768, %v768
    %v785 = vpack.c.bf16 %v769, %v769
    %v786 = vpack.c.bf16 %v770, %v770
    %v787 = vpack.c.bf16 %v771, %v771
    %v788 = vpack.c.bf16 %v772, %v772
    %v789 = vpack.c.bf16 %v773, %v773
    %v790 = vpack.c.bf16 %v774, %v774
    %v791 = vpack.c.bf16 %v775, %v775
    %v792 = vpack.c.bf16 %v776, %v776
    %v793 = vpack.c.bf16 %v777, %v777
    %v794 = vpack.c.bf16 %v778, %v778
    %v795 = vpack.c.bf16 %v779, %v779
    %v812 = vunpack.c.l.b16 %v780
    %v813 = vunpack.c.l.b16 %v781
    %v814 = vunpack.c.l.b16 %v782
    %v815 = vunpack.c.l.b16 %v783
    %v816 = vunpack.c.l.b16 %v784
    %v817 = vunpack.c.l.b16 %v785
    %v818 = vunpack.c.l.b16 %v786
    %v819 = vunpack.c.l.b16 %v787
    %v820 = vunpack.c.l.b16 %v788
    %v821 = vunpack.c.l.b16 %v789
    %v822 = vunpack.c.l.b16 %v790
    %v823 = vunpack.c.l.b16 %v791
    %v824 = vunpack.c.l.b16 %v792
    %v825 = vunpack.c.l.b16 %v793
    %v826 = vunpack.c.l.b16 %v794
    %v827 = vunpack.c.l.b16 %v795
    %v828 = vpack.c.b16 %v813, %v812
    %v829 = vpack.c.b16 %v815, %v814
    %v830 = vpack.c.b16 %v817, %v816
    %v831 = vpack.c.b16 %v819, %v818
    %v832 = vpack.c.b16 %v821, %v820
    %v833 = vpack.c.b16 %v823, %v822
    %v834 = vpack.c.b16 %v825, %v824
    %v835 = vpack.c.b16 %v827, %v826
    %844 = vmatpush.bf16.msra.mxu0 %v835
    %845 = vmatpush.bf16.msra.mxu0 %v834
    %846 = vmatpush.bf16.msra.mxu0 %v833
    %847 = vmatpush.bf16.msra.mxu0 %v832
    %848 = vmatpush.bf16.msra.mxu0 %v831
    %849 = vmatpush.bf16.msra.mxu0 %v830
    %850 = vmatpush.bf16.msra.mxu0 %v829
    %851 = vmatpush.bf16.msra.mxu0 %v828
    %852 = vmatmul.bf16.gmra.mxu0 %v278
    %v853 = vpop.f32.mrf.mxu0
    %v854 = vadd.f32 0.0, %v853
    %v855 = vpop.f32.mrf.mxu0
    %v856 = vadd.f32 0.0, %v855
    %857 = vmatmul.bf16.gmra.mxu0 %v279
    %v858 = vpop.f32.mrf.mxu0
    %v859 = vadd.f32 0.0, %v858
    %v860 = vpop.f32.mrf.mxu0
    %v861 = vadd.f32 0.0, %v860
    %862 = vmatmul.bf16.gmra.mxu0 %v280
    %v863 = vpop.f32.mrf.mxu0
    %v864 = vadd.f32 0.0, %v863
    %v865 = vpop.f32.mrf.mxu0
    %v866 = vadd.f32 0.0, %v865
    %867 = vmatmul.bf16.gmra.mxu0 %v281
    %v868 = vpop.f32.mrf.mxu0
    %v869 = vadd.f32 0.0, %v868
    %v870 = vpop.f32.mrf.mxu0
    %v871 = vadd.f32 0.0, %v870
    %872 = vmatmul.bf16.gmra.mxu0 %v282
    %v873 = vpop.f32.mrf.mxu0
    %v874 = vadd.f32 0.0, %v873
    %v875 = vpop.f32.mrf.mxu0
    %v876 = vadd.f32 0.0, %v875
    %877 = vmatmul.bf16.gmra.mxu0 %v283
    %v878 = vpop.f32.mrf.mxu0
    %v879 = vadd.f32 0.0, %v878
    %v880 = vpop.f32.mrf.mxu0
    %v881 = vadd.f32 0.0, %v880
    %882 = vmatmul.bf16.gmra.mxu0 %v284
    %v883 = vpop.f32.mrf.mxu0
    %v884 = vadd.f32 0.0, %v883
    %v885 = vpop.f32.mrf.mxu0
    %v886 = vadd.f32 0.0, %v885
    %887 = vmatmul.bf16.gmra.mxu0 %v285
    %v888 = vpop.f32.mrf.mxu0
    %v889 = vadd.f32 0.0, %v888
    %v890 = vpop.f32.mrf.mxu0
    %v891 = vadd.f32 0.0, %v890
    %892 = vdwg.mxu0
    %s893 = sld [smem:[#allocation3 + $0x1]]
    %s894 = sadd.f32 %s893, 1.0
    %v895 = vunpack.c.l.bf16 %v780
    %v896 = vunpack.c.l.bf16 %v781
    %v897 = vunpack.c.l.bf16 %v782
    %v898 = vunpack.c.l.bf16 %v783
    %v899 = vunpack.c.l.bf16 %v784
    %v900 = vunpack.c.l.bf16 %v785
    %v901 = vunpack.c.l.bf16 %v786
    %v902 = vunpack.c.l.bf16 %v787
    %v903 = vunpack.c.l.bf16 %v788
    %v904 = vunpack.c.l.bf16 %v789
    %v905 = vunpack.c.l.bf16 %v790
    %v906 = vunpack.c.l.bf16 %v791
    %v907 = vunpack.c.l.bf16 %v792
    %v908 = vunpack.c.l.bf16 %v793
    %v909 = vunpack.c.l.bf16 %v794
    %v910 = vunpack.c.l.bf16 %v795
    %v911 = vstv %s894
    %v912 = vmul.f32 %v911, %v895
    %v913 = vmul.f32 %v911, %v896
    %v914 = vmul.f32 %v911, %v897
    %v915 = vmul.f32 %v911, %v898
    %v916 = vmul.f32 %v911, %v899
    %v917 = vmul.f32 %v911, %v900
    %v918 = vmul.f32 %v911, %v901
    %v919 = vmul.f32 %v911, %v902
    %v920 = vmul.f32 %v911, %v903
    %v921 = vmul.f32 %v911, %v904
    %v922 = vmul.f32 %v911, %v905
    %v923 = vmul.f32 %v911, %v906
    %v924 = vmul.f32 %v911, %v907
    %v925 = vmul.f32 %v911, %v908
    %v926 = vmul.f32 %v911, %v909
    %v927 = vmul.f32 %v911, %v910
    %v928 = vadd.f32 %v912, %v854
    %v929 = vadd.f32 %v913, %v856
    %v930 = vadd.f32 %v914, %v859
    %v931 = vadd.f32 %v915, %v861
    %v932 = vadd.f32 %v916, %v864
    %v933 = vadd.f32 %v917, %v866
    %v934 = vadd.f32 %v918, %v869
    %v935 = vadd.f32 %v919, %v871
    %v936 = vadd.f32 %v920, %v874
    %v937 = vadd.f32 %v921, %v876
    %v938 = vadd.f32 %v922, %v879
    %v939 = vadd.f32 %v923, %v881
    %v940 = vadd.f32 %v924, %v884
    %v941 = vadd.f32 %v925, %v886
    %v942 = vadd.f32 %v926, %v889
    %v943 = vadd.f32 %v927, %v891
    %v944 = vpack.c.bf16 %v929, %v928
    %v945 = vpack.c.bf16 %v931, %v930
    %v946 = vpack.c.bf16 %v933, %v932
    %v947 = vpack.c.bf16 %v935, %v934
    %v948 = vpack.c.bf16 %v937, %v936
    %v949 = vpack.c.bf16 %v939, %v938
    %v950 = vpack.c.bf16 %v941, %v940
    %v951 = vpack.c.bf16 %v943, %v942
    %s952 = scalar_lea.vmem [#allocation10], 64
    %v953 = vld [vmem:[%s952] sm:$0xf]
    %v954 = vld [vmem:[%s952 + $0x4] sm:$0xf]
    %v955 = vld [vmem:[%s952 + $0x8] sm:$0xf]
    %v956 = vld [vmem:[%s952 + $0xc] sm:$0xf]
    %v957 = vld [vmem:[%s952 + $0x10] sm:$0xf]
    %v958 = vld [vmem:[%s952 + $0x14] sm:$0xf]
    %v959 = vld [vmem:[%s952 + $0x18] sm:$0xf]
    %v960 = vld [vmem:[%s952 + $0x1c] sm:$0xf]
    %v961 = vld [vmem:[%s952 + $0x20] sm:$0xf]
    %v962 = vld [vmem:[%s952 + $0x24] sm:$0xf]
    %v963 = vld [vmem:[%s952 + $0x28] sm:$0xf]
    %v964 = vld [vmem:[%s952 + $0x2c] sm:$0xf]
    %v965 = vld [vmem:[%s952 + $0x30] sm:$0xf]
    %v966 = vld [vmem:[%s952 + $0x34] sm:$0xf]
    %v967 = vld [vmem:[%s952 + $0x38] sm:$0xf]
    %v968 = vld [vmem:[%s952 + $0x3c] sm:$0xf]
    %s969 = scalar_lea.vmem %s5, 1
    %v970 = vld [vmem:[%s969] sm:$0x1]
    %v972 = vperm.slane %v970, 0
    %v990 = vunpack.c.l.b16 %v953
    %v991 = vunpack.c.l.b16 %v954
    %v992 = vunpack.c.l.b16 %v955
    %v993 = vunpack.c.l.b16 %v956
    %v994 = vunpack.c.l.b16 %v957
    %v995 = vunpack.c.l.b16 %v958
    %v996 = vunpack.c.l.b16 %v959
    %v997 = vunpack.c.l.b16 %v960
    %v998 = vunpack.c.l.b16 %v961
    %v999 = vunpack.c.l.b16 %v962
    %v1000 = vunpack.c.l.b16 %v963
    %v1001 = vunpack.c.l.b16 %v964
    %v1002 = vunpack.c.l.b16 %v965
    %v1003 = vunpack.c.l.b16 %v966
    %v1004 = vunpack.c.l.b16 %v967
    %v1005 = vunpack.c.l.b16 %v968
    %v1006 = vpack.c.b16 %v991, %v990
    %v1007 = vpack.c.b16 %v993, %v992
    %v1008 = vpack.c.b16 %v995, %v994
    %v1009 = vpack.c.b16 %v997, %v996
    %v1010 = vpack.c.b16 %v999, %v998
    %v1011 = vpack.c.b16 %v1001, %v1000
    %v1012 = vpack.c.b16 %v1003, %v1002
    %v1013 = vpack.c.b16 %v1005, %v1004
    %1022 = vmatpush.bf16.msra.mxu0 %v1013
    %1023 = vmatpush.bf16.msra.mxu0 %v1012
    %1024 = vmatpush.bf16.msra.mxu0 %v1011
    %1025 = vmatpush.bf16.msra.mxu0 %v1010
    %1026 = vmatpush.bf16.msra.mxu0 %v1009
    %1027 = vmatpush.bf16.msra.mxu0 %v1008
    %1028 = vmatpush.bf16.msra.mxu0 %v1007
    %1029 = vmatpush.bf16.msra.mxu0 %v1006
    %1030 = vmatmul.bf16.gmra.mxu0 %v944
    %v1031 = vpop.f32.mrf.mxu0
    %v1032 = vadd.f32 %v972, %v1031
    %v1033 = vpop.f32.mrf.mxu0
    %v1034 = vadd.f32 %v972, %v1033
    %1035 = vmatmul.bf16.gmra.mxu0 %v945
    %v1036 = vpop.f32.mrf.mxu0
    %v1037 = vadd.f32 %v972, %v1036
    %v1038 = vpop.f32.mrf.mxu0
    %v1039 = vadd.f32 %v972, %v1038
    %1040 = vmatmul.bf16.gmra.mxu0 %v946
    %v1041 = vpop.f32.mrf.mxu0
    %v1042 = vadd.f32 %v972, %v1041
    %v1043 = vpop.f32.mrf.mxu0
    %v1044 = vadd.f32 %v972, %v1043
    %1045 = vmatmul.bf16.gmra.mxu0 %v947
    %v1046 = vpop.f32.mrf.mxu0
    %v1047 = vadd.f32 %v972, %v1046
    %v1048 = vpop.f32.mrf.mxu0
    %v1049 = vadd.f32 %v972, %v1048
    %1050 = vmatmul.bf16.gmra.mxu0 %v948
    %v1051 = vpop.f32.mrf.mxu0
    %v1052 = vadd.f32 %v972, %v1051
    %v1053 = vpop.f32.mrf.mxu0
    %v1054 = vadd.f32 %v972, %v1053
    %1055 = vmatmul.bf16.gmra.mxu0 %v949
    %v1056 = vpop.f32.mrf.mxu0
    %v1057 = vadd.f32 %v972, %v1056
    %v1058 = vpop.f32.mrf.mxu0
    %v1059 = vadd.f32 %v972, %v1058
    %1060 = vmatmul.bf16.gmra.mxu0 %v950
    %v1061 = vpop.f32.mrf.mxu0
    %v1062 = vadd.f32 %v972, %v1061
    %v1063 = vpop.f32.mrf.mxu0
    %v1064 = vadd.f32 %v972, %v1063
    %1065 = vmatmul.bf16.gmra.mxu0 %v951
    %v1066 = vpop.f32.mrf.mxu0
    %v1067 = vadd.f32 %v972, %v1066
    %v1068 = vpop.f32.mrf.mxu0
    %v1069 = vadd.f32 %v972, %v1068
    %1070 = vdwg.mxu0
    %v1071 = vmax.f32 %v1032, 0.0
    %v1072 = vmax.f32 %v1034, 0.0
    %v1073 = vmax.f32 %v1037, 0.0
    %v1074 = vmax.f32 %v1039, 0.0
    %v1075 = vmax.f32 %v1042, 0.0
    %v1076 = vmax.f32 %v1044, 0.0
    %v1077 = vmax.f32 %v1047, 0.0
    %v1078 = vmax.f32 %v1049, 0.0
    %v1079 = vmax.f32 %v1052, 0.0
    %v1080 = vmax.f32 %v1054, 0.0
    %v1081 = vmax.f32 %v1057, 0.0
    %v1082 = vmax.f32 %v1059, 0.0
    %v1083 = vmax.f32 %v1062, 0.0
    %v1084 = vmax.f32 %v1064, 0.0
    %v1085 = vmax.f32 %v1067, 0.0
    %v1086 = vmax.f32 %v1069, 0.0
    %v1087 = vpack.c.bf16 %v1072, %v1071
    %v1088 = vpack.c.bf16 %v1074, %v1073
    %v1089 = vpack.c.bf16 %v1076, %v1075
    %v1090 = vpack.c.bf16 %v1078, %v1077
    %v1091 = vpack.c.bf16 %v1080, %v1079
    %v1092 = vpack.c.bf16 %v1082, %v1081
    %v1093 = vpack.c.bf16 %v1084, %v1083
    %v1094 = vpack.c.bf16 %v1086, %v1085
    %s1095 = scalar_lea.vmem [#allocation12], 64
    %v1096 = vld [vmem:[%s1095] sm:$0xf]
    %v1097 = vld [vmem:[%s1095 + $0x4] sm:$0xf]
    %v1098 = vld [vmem:[%s1095 + $0x8] sm:$0xf]
    %v1099 = vld [vmem:[%s1095 + $0xc] sm:$0xf]
    %v1100 = vld [vmem:[%s1095 + $0x10] sm:$0xf]
    %v1101 = vld [vmem:[%s1095 + $0x14] sm:$0xf]
    %v1102 = vld [vmem:[%s1095 + $0x18] sm:$0xf]
    %v1103 = vld [vmem:[%s1095 + $0x1c] sm:$0xf]
    %v1104 = vld [vmem:[%s1095 + $0x20] sm:$0xf]
    %v1105 = vld [vmem:[%s1095 + $0x24] sm:$0xf]
    %v1106 = vld [vmem:[%s1095 + $0x28] sm:$0xf]
    %v1107 = vld [vmem:[%s1095 + $0x2c] sm:$0xf]
    %v1108 = vld [vmem:[%s1095 + $0x30] sm:$0xf]
    %v1109 = vld [vmem:[%s1095 + $0x34] sm:$0xf]
    %v1110 = vld [vmem:[%s1095 + $0x38] sm:$0xf]
    %v1111 = vld [vmem:[%s1095 + $0x3c] sm:$0xf]
    %s1112 = scalar_lea.vmem %s7, 1
    %v1113 = vld [vmem:[%s1112] sm:$0x1]
    %v1115 = vperm.slane %v1113, 0
    %v1133 = vunpack.c.l.b16 %v1096
    %v1134 = vunpack.c.l.b16 %v1097
    %v1135 = vunpack.c.l.b16 %v1098
    %v1136 = vunpack.c.l.b16 %v1099
    %v1137 = vunpack.c.l.b16 %v1100
    %v1138 = vunpack.c.l.b16 %v1101
    %v1139 = vunpack.c.l.b16 %v1102
    %v1140 = vunpack.c.l.b16 %v1103
    %v1141 = vunpack.c.l.b16 %v1104
    %v1142 = vunpack.c.l.b16 %v1105
    %v1143 = vunpack.c.l.b16 %v1106
    %v1144 = vunpack.c.l.b16 %v1107
    %v1145 = vunpack.c.l.b16 %v1108
    %v1146 = vunpack.c.l.b16 %v1109
    %v1147 = vunpack.c.l.b16 %v1110
    %v1148 = vunpack.c.l.b16 %v1111
    %v1149 = vpack.c.b16 %v1134, %v1133
    %v1150 = vpack.c.b16 %v1136, %v1135
    %v1151 = vpack.c.b16 %v1138, %v1137
    %v1152 = vpack.c.b16 %v1140, %v1139
    %v1153 = vpack.c.b16 %v1142, %v1141
    %v1154 = vpack.c.b16 %v1144, %v1143
    %v1155 = vpack.c.b16 %v1146, %v1145
    %v1156 = vpack.c.b16 %v1148, %v1147
    %1165 = vmatpush.bf16.msra.mxu0 %v1156
    %1166 = vmatpush.bf16.msra.mxu0 %v1155
    %1167 = vmatpush.bf16.msra.mxu0 %v1154
    %1168 = vmatpush.bf16.msra.mxu0 %v1153
    %1169 = vmatpush.bf16.msra.mxu0 %v1152
    %1170 = vmatpush.bf16.msra.mxu0 %v1151
    %1171 = vmatpush.bf16.msra.mxu0 %v1150
    %1172 = vmatpush.bf16.msra.mxu0 %v1149
    %1173 = vmatmul.bf16.gmra.mxu0 %v1087
    %v1174 = vpop.f32.mrf.mxu0
    %v1175 = vadd.f32 %v1115, %v1174
    %v1176 = vpop.f32.mrf.mxu0
    %v1177 = vadd.f32 %v1115, %v1176
    %1178 = vmatmul.bf16.gmra.mxu0 %v1088
    %v1179 = vpop.f32.mrf.mxu0
    %v1180 = vadd.f32 %v1115, %v1179
    %v1181 = vpop.f32.mrf.mxu0
    %v1182 = vadd.f32 %v1115, %v1181
    %1183 = vmatmul.bf16.gmra.mxu0 %v1089
    %v1184 = vpop.f32.mrf.mxu0
    %v1185 = vadd.f32 %v1115, %v1184
    %v1186 = vpop.f32.mrf.mxu0
    %v1187 = vadd.f32 %v1115, %v1186
    %1188 = vmatmul.bf16.gmra.mxu0 %v1090
    %v1189 = vpop.f32.mrf.mxu0
    %v1190 = vadd.f32 %v1115, %v1189
    %v1191 = vpop.f32.mrf.mxu0
    %v1192 = vadd.f32 %v1115, %v1191
    %1193 = vmatmul.bf16.gmra.mxu0 %v1091
    %v1194 = vpop.f32.mrf.mxu0
    %v1195 = vadd.f32 %v1115, %v1194
    %v1196 = vpop.f32.mrf.mxu0
    %v1197 = vadd.f32 %v1115, %v1196
    %1198 = vmatmul.bf16.gmra.mxu0 %v1092
    %v1199 = vpop.f32.mrf.mxu0
    %v1200 = vadd.f32 %v1115, %v1199
    %v1201 = vpop.f32.mrf.mxu0
    %v1202 = vadd.f32 %v1115, %v1201
    %1203 = vmatmul.bf16.gmra.mxu0 %v1093
    %v1204 = vpop.f32.mrf.mxu0
    %v1205 = vadd.f32 %v1115, %v1204
    %v1206 = vpop.f32.mrf.mxu0
    %v1207 = vadd.f32 %v1115, %v1206
    %1208 = vmatmul.bf16.gmra.mxu0 %v1094
    %v1209 = vpop.f32.mrf.mxu0
    %v1210 = vadd.f32 %v1115, %v1209
    %v1211 = vpop.f32.mrf.mxu0
    %v1212 = vadd.f32 %v1115, %v1211
    %1213 = vdwg.mxu0
    %v1214 = vmax.f32 %v1175, 0.0
    %v1215 = vmax.f32 %v1177, 0.0
    %v1216 = vmax.f32 %v1180, 0.0
    %v1217 = vmax.f32 %v1182, 0.0
    %v1218 = vmax.f32 %v1185, 0.0
    %v1219 = vmax.f32 %v1187, 0.0
    %v1220 = vmax.f32 %v1190, 0.0
    %v1221 = vmax.f32 %v1192, 0.0
    %v1222 = vmax.f32 %v1195, 0.0
    %v1223 = vmax.f32 %v1197, 0.0
    %v1224 = vmax.f32 %v1200, 0.0
    %v1225 = vmax.f32 %v1202, 0.0
    %v1226 = vmax.f32 %v1205, 0.0
    %v1227 = vmax.f32 %v1207, 0.0
    %v1228 = vmax.f32 %v1210, 0.0
    %v1229 = vmax.f32 %v1212, 0.0
    %s1230 = scalar_lea.vmem [#allocation13], 1
    %v1231 = vld [vmem:[%s1230] sm:$0x1]
    %v1233 = vperm.slane %v1231, 0
    %v1235 = vmul.f32 %v1214, %v1233
    %v1236 = vmul.f32 %v1215, %v1233
    %v1237 = vmul.f32 %v1216, %v1233
    %v1238 = vmul.f32 %v1217, %v1233
    %v1239 = vmul.f32 %v1218, %v1233
    %v1240 = vmul.f32 %v1219, %v1233
    %v1241 = vmul.f32 %v1220, %v1233
    %v1242 = vmul.f32 %v1221, %v1233
    %v1243 = vmul.f32 %v1222, %v1233
    %v1244 = vmul.f32 %v1223, %v1233
    %v1245 = vmul.f32 %v1224, %v1233
    %v1246 = vmul.f32 %v1225, %v1233
    %v1247 = vmul.f32 %v1226, %v1233
    %v1248 = vmul.f32 %v1227, %v1233
    %v1249 = vmul.f32 %v1228, %v1233
    %v1250 = vmul.f32 %v1229, %v1233
    %s1251 = scalar_lea.vmem [#allocation15], 1
    %v1252 = vld [vmem:[%s1251] sm:$0x1]
    %v1254 = vperm.slane %v1252, 0
    %v1256 = vadd.f32 %v1235, %v1254
    %v1257 = vadd.f32 %v1236, %v1254
    %v1258 = vadd.f32 %v1237, %v1254
    %v1259 = vadd.f32 %v1238, %v1254
    %v1260 = vadd.f32 %v1239, %v1254
    %v1261 = vadd.f32 %v1240, %v1254
    %v1262 = vadd.f32 %v1241, %v1254
    %v1263 = vadd.f32 %v1242, %v1254
    %v1264 = vadd.f32 %v1243, %v1254
    %v1265 = vadd.f32 %v1244, %v1254
    %v1266 = vadd.f32 %v1245, %v1254
    %v1267 = vadd.f32 %v1246, %v1254
    %v1268 = vadd.f32 %v1247, %v1254
    %v1269 = vadd.f32 %v1248, %v1254
    %v1270 = vadd.f32 %v1249, %v1254
    %v1271 = vadd.f32 %v1250, %v1254
    %v1272 = vmax.f32 %v1256, 0.0
    %v1273 = vmax.f32 %v1257, 0.0
    %v1274 = vmax.f32 %v1258, 0.0
    %v1275 = vmax.f32 %v1259, 0.0
    %v1276 = vmax.f32 %v1260, 0.0
    %v1277 = vmax.f32 %v1261, 0.0
    %v1278 = vmax.f32 %v1262, 0.0
    %v1279 = vmax.f32 %v1263, 0.0
    %v1280 = vmax.f32 %v1264, 0.0
    %v1281 = vmax.f32 %v1265, 0.0
    %v1282 = vmax.f32 %v1266, 0.0
    %v1283 = vmax.f32 %v1267, 0.0
    %v1284 = vmax.f32 %v1268, 0.0
    %v1285 = vmax.f32 %v1269, 0.0
    %v1286 = vmax.f32 %v1270, 0.0
    %v1287 = vmax.f32 %v1271, 0.0
    %v1288 = vpack.c.bf16 %v1272, %v1272
    %v1289 = vpack.c.bf16 %v1273, %v1273
    %v1290 = vpack.c.bf16 %v1274, %v1274
    %v1291 = vpack.c.bf16 %v1275, %v1275
    %v1292 = vpack.c.bf16 %v1276, %v1276
    %v1293 = vpack.c.bf16 %v1277, %v1277
    %v1294 = vpack.c.bf16 %v1278, %v1278
    %v1295 = vpack.c.bf16 %v1279, %v1279
    %v1296 = vpack.c.bf16 %v1280, %v1280
    %v1297 = vpack.c.bf16 %v1281, %v1281
    %v1298 = vpack.c.bf16 %v1282, %v1282
    %v1299 = vpack.c.bf16 %v1283, %v1283
    %v1300 = vpack.c.bf16 %v1284, %v1284
    %v1301 = vpack.c.bf16 %v1285, %v1285
    %v1302 = vpack.c.bf16 %v1286, %v1286
    %v1303 = vpack.c.bf16 %v1287, %v1287
    %v1320 = vunpack.c.l.b16 %v1288
    %v1321 = vunpack.c.l.b16 %v1289
    %v1322 = vunpack.c.l.b16 %v1290
    %v1323 = vunpack.c.l.b16 %v1291
    %v1324 = vunpack.c.l.b16 %v1292
    %v1325 = vunpack.c.l.b16 %v1293
    %v1326 = vunpack.c.l.b16 %v1294
    %v1327 = vunpack.c.l.b16 %v1295
    %v1328 = vunpack.c.l.b16 %v1296
    %v1329 = vunpack.c.l.b16 %v1297
    %v1330 = vunpack.c.l.b16 %v1298
    %v1331 = vunpack.c.l.b16 %v1299
    %v1332 = vunpack.c.l.b16 %v1300
    %v1333 = vunpack.c.l.b16 %v1301
    %v1334 = vunpack.c.l.b16 %v1302
    %v1335 = vunpack.c.l.b16 %v1303
    %v1336 = vpack.c.b16 %v1321, %v1320
    %v1337 = vpack.c.b16 %v1323, %v1322
    %v1338 = vpack.c.b16 %v1325, %v1324
    %v1339 = vpack.c.b16 %v1327, %v1326
    %v1340 = vpack.c.b16 %v1329, %v1328
    %v1341 = vpack.c.b16 %v1331, %v1330
    %v1342 = vpack.c.b16 %v1333, %v1332
    %v1343 = vpack.c.b16 %v1335, %v1334
    %1352 = vmatpush.bf16.msra.mxu0 %v1343
    %1353 = vmatpush.bf16.msra.mxu0 %v1342
    %1354 = vmatpush.bf16.msra.mxu0 %v1341
    %1355 = vmatpush.bf16.msra.mxu0 %v1340
    %1356 = vmatpush.bf16.msra.mxu0 %v1339
    %1357 = vmatpush.bf16.msra.mxu0 %v1338
    %1358 = vmatpush.bf16.msra.mxu0 %v1337
    %1359 = vmatpush.bf16.msra.mxu0 %v1336
    %1360 = vmatmul.bf16.gmra.mxu0 %v278
    %v1361 = vpop.f32.mrf.mxu0
    %v1362 = vadd.f32 0.0, %v1361
    %v1363 = vpop.f32.mrf.mxu0
    %v1364 = vadd.f32 0.0, %v1363
    %1365 = vmatmul.bf16.gmra.mxu0 %v279
    %v1366 = vpop.f32.mrf.mxu0
    %v1367 = vadd.f32 0.0, %v1366
    %v1368 = vpop.f32.mrf.mxu0
    %v1369 = vadd.f32 0.0, %v1368
    %1370 = vmatmul.bf16.gmra.mxu0 %v280
    %v1371 = vpop.f32.mrf.mxu0
    %v1372 = vadd.f32 0.0, %v1371
    %v1373 = vpop.f32.mrf.mxu0
    %v1374 = vadd.f32 0.0, %v1373
    %1375 = vmatmul.bf16.gmra.mxu0 %v281
    %v1376 = vpop.f32.mrf.mxu0
    %v1377 = vadd.f32 0.0, %v1376
    %v1378 = vpop.f32.mrf.mxu0
    %v1379 = vadd.f32 0.0, %v1378
    %1380 = vmatmul.bf16.gmra.mxu0 %v282
    %v1381 = vpop.f32.mrf.mxu0
    %v1382 = vadd.f32 0.0, %v1381
    %v1383 = vpop.f32.mrf.mxu0
    %v1384 = vadd.f32 0.0, %v1383
    %1385 = vmatmul.bf16.gmra.mxu0 %v283
    %v1386 = vpop.f32.mrf.mxu0
    %v1387 = vadd.f32 0.0, %v1386
    %v1388 = vpop.f32.mrf.mxu0
    %v1389 = vadd.f32 0.0, %v1388
    %1390 = vmatmul.bf16.gmra.mxu0 %v284
    %v1391 = vpop.f32.mrf.mxu0
    %v1392 = vadd.f32 0.0, %v1391
    %v1393 = vpop.f32.mrf.mxu0
    %v1394 = vadd.f32 0.0, %v1393
    %1395 = vmatmul.bf16.gmra.mxu0 %v285
    %v1396 = vpop.f32.mrf.mxu0
    %v1397 = vadd.f32 0.0, %v1396
    %v1398 = vpop.f32.mrf.mxu0
    %v1399 = vadd.f32 0.0, %v1398
    %1400 = vdwg.mxu0
    %s1401 = sld [smem:[#allocation3 + $0x2]]
    %s1402 = sadd.f32 %s1401, 1.0
    %v1403 = vunpack.c.l.bf16 %v1288
    %v1404 = vunpack.c.l.bf16 %v1289
    %v1405 = vunpack.c.l.bf16 %v1290
    %v1406 = vunpack.c.l.bf16 %v1291
    %v1407 = vunpack.c.l.bf16 %v1292
    %v1408 = vunpack.c.l.bf16 %v1293
    %v1409 = vunpack.c.l.bf16 %v1294
    %v1410 = vunpack.c.l.bf16 %v1295
    %v1411 = vunpack.c.l.bf16 %v1296
    %v1412 = vunpack.c.l.bf16 %v1297
    %v1413 = vunpack.c.l.bf16 %v1298
    %v1414 = vunpack.c.l.bf16 %v1299
    %v1415 = vunpack.c.l.bf16 %v1300
    %v1416 = vunpack.c.l.bf16 %v1301
    %v1417 = vunpack.c.l.bf16 %v1302
    %v1418 = vunpack.c.l.bf16 %v1303
    %v1419 = vstv %s1402
    %v1420 = vmul.f32 %v1419, %v1403
    %v1421 = vmul.f32 %v1419, %v1404
    %v1422 = vmul.f32 %v1419, %v1405
    %v1423 = vmul.f32 %v1419, %v1406
    %v1424 = vmul.f32 %v1419, %v1407
    %v1425 = vmul.f32 %v1419, %v1408
    %v1426 = vmul.f32 %v1419, %v1409
    %v1427 = vmul.f32 %v1419, %v1410
    %v1428 = vmul.f32 %v1419, %v1411
    %v1429 = vmul.f32 %v1419, %v1412
    %v1430 = vmul.f32 %v1419, %v1413
    %v1431 = vmul.f32 %v1419, %v1414
    %v1432 = vmul.f32 %v1419, %v1415
    %v1433 = vmul.f32 %v1419, %v1416
    %v1434 = vmul.f32 %v1419, %v1417
    %v1435 = vmul.f32 %v1419, %v1418
    %v1436 = vadd.f32 %v1420, %v1362
    %v1437 = vadd.f32 %v1421, %v1364
    %v1438 = vadd.f32 %v1422, %v1367
    %v1439 = vadd.f32 %v1423, %v1369
    %v1440 = vadd.f32 %v1424, %v1372
    %v1441 = vadd.f32 %v1425, %v1374
    %v1442 = vadd.f32 %v1426, %v1377
    %v1443 = vadd.f32 %v1427, %v1379
    %v1444 = vadd.f32 %v1428, %v1382
    %v1445 = vadd.f32 %v1429, %v1384
    %v1446 = vadd.f32 %v1430, %v1387
    %v1447 = vadd.f32 %v1431, %v1389
    %v1448 = vadd.f32 %v1432, %v1392
    %v1449 = vadd.f32 %v1433, %v1394
    %v1450 = vadd.f32 %v1434, %v1397
    %v1451 = vadd.f32 %v1435, %v1399
    %v1452 = vpack.c.bf16 %v1437, %v1436
    %v1453 = vpack.c.bf16 %v1439, %v1438
    %v1454 = vpack.c.bf16 %v1441, %v1440
    %v1455 = vpack.c.bf16 %v1443, %v1442
    %v1456 = vpack.c.bf16 %v1445, %v1444
    %v1457 = vpack.c.bf16 %v1447, %v1446
    %v1458 = vpack.c.bf16 %v1449, %v1448
    %v1459 = vpack.c.bf16 %v1451, %v1450
    %s1460 = scalar_lea.vmem [#allocation10], 128
    %v1461 = vld [vmem:[%s1460] sm:$0xf]
    %v1462 = vld [vmem:[%s1460 + $0x4] sm:$0xf]
    %v1463 = vld [vmem:[%s1460 + $0x8] sm:$0xf]
    %v1464 = vld [vmem:[%s1460 + $0xc] sm:$0xf]
    %v1465 = vld [vmem:[%s1460 + $0x10] sm:$0xf]
    %v1466 = vld [vmem:[%s1460 + $0x14] sm:$0xf]
    %v1467 = vld [vmem:[%s1460 + $0x18] sm:$0xf]
    %v1468 = vld [vmem:[%s1460 + $0x1c] sm:$0xf]
    %v1469 = vld [vmem:[%s1460 + $0x20] sm:$0xf]
    %v1470 = vld [vmem:[%s1460 + $0x24] sm:$0xf]
    %v1471 = vld [vmem:[%s1460 + $0x28] sm:$0xf]
    %v1472 = vld [vmem:[%s1460 + $0x2c] sm:$0xf]
    %v1473 = vld [vmem:[%s1460 + $0x30] sm:$0xf]
    %v1474 = vld [vmem:[%s1460 + $0x34] sm:$0xf]
    %v1475 = vld [vmem:[%s1460 + $0x38] sm:$0xf]
    %v1476 = vld [vmem:[%s1460 + $0x3c] sm:$0xf]
    %s1477 = scalar_lea.vmem %s5, 2
    %v1478 = vld [vmem:[%s1477] sm:$0x1]
    %v1480 = vperm.slane %v1478, 0
    %v1498 = vunpack.c.l.b16 %v1461
    %v1499 = vunpack.c.l.b16 %v1462
    %v1500 = vunpack.c.l.b16 %v1463
    %v1501 = vunpack.c.l.b16 %v1464
    %v1502 = vunpack.c.l.b16 %v1465
    %v1503 = vunpack.c.l.b16 %v1466
    %v1504 = vunpack.c.l.b16 %v1467
    %v1505 = vunpack.c.l.b16 %v1468
    %v1506 = vunpack.c.l.b16 %v1469
    %v1507 = vunpack.c.l.b16 %v1470
    %v1508 = vunpack.c.l.b16 %v1471
    %v1509 = vunpack.c.l.b16 %v1472
    %v1510 = vunpack.c.l.b16 %v1473
    %v1511 = vunpack.c.l.b16 %v1474
    %v1512 = vunpack.c.l.b16 %v1475
    %v1513 = vunpack.c.l.b16 %v1476
    %v1514 = vpack.c.b16 %v1499, %v1498
    %v1515 = vpack.c.b16 %v1501, %v1500
    %v1516 = vpack.c.b16 %v1503, %v1502
    %v1517 = vpack.c.b16 %v1505, %v1504
    %v1518 = vpack.c.b16 %v1507, %v1506
    %v1519 = vpack.c.b16 %v1509, %v1508
    %v1520 = vpack.c.b16 %v1511, %v1510
    %v1521 = vpack.c.b16 %v1513, %v1512
    %1530 = vmatpush.bf16.msra.mxu0 %v1521
    %1531 = vmatpush.bf16.msra.mxu0 %v1520
    %1532 = vmatpush.bf16.msra.mxu0 %v1519
    %1533 = vmatpush.bf16.msra.mxu0 %v1518
    %1534 = vmatpush.bf16.msra.mxu0 %v1517
    %1535 = vmatpush.bf16.msra.mxu0 %v1516
    %1536 = vmatpush.bf16.msra.mxu0 %v1515
    %1537 = vmatpush.bf16.msra.mxu0 %v1514
    %1538 = vmatmul.bf16.gmra.mxu0 %v1452
    %v1539 = vpop.f32.mrf.mxu0
    %v1540 = vadd.f32 %v1480, %v1539
    %v1541 = vpop.f32.mrf.mxu0
    %v1542 = vadd.f32 %v1480, %v1541
    %1543 = vmatmul.bf16.gmra.mxu0 %v1453
    %v1544 = vpop.f32.mrf.mxu0
    %v1545 = vadd.f32 %v1480, %v1544
    %v1546 = vpop.f32.mrf.mxu0
    %v1547 = vadd.f32 %v1480, %v1546
    %1548 = vmatmul.bf16.gmra.mxu0 %v1454
    %v1549 = vpop.f32.mrf.mxu0
    %v1550 = vadd.f32 %v1480, %v1549
    %v1551 = vpop.f32.mrf.mxu0
    %v1552 = vadd.f32 %v1480, %v1551
    %1553 = vmatmul.bf16.gmra.mxu0 %v1455
    %v1554 = vpop.f32.mrf.mxu0
    %v1555 = vadd.f32 %v1480, %v1554
    %v1556 = vpop.f32.mrf.mxu0
    %v1557 = vadd.f32 %v1480, %v1556
    %1558 = vmatmul.bf16.gmra.mxu0 %v1456
    %v1559 = vpop.f32.mrf.mxu0
    %v1560 = vadd.f32 %v1480, %v1559
    %v1561 = vpop.f32.mrf.mxu0
    %v1562 = vadd.f32 %v1480, %v1561
    %1563 = vmatmul.bf16.gmra.mxu0 %v1457
    %v1564 = vpop.f32.mrf.mxu0
    %v1565 = vadd.f32 %v1480, %v1564
    %v1566 = vpop.f32.mrf.mxu0
    %v1567 = vadd.f32 %v1480, %v1566
    %1568 = vmatmul.bf16.gmra.mxu0 %v1458
    %v1569 = vpop.f32.mrf.mxu0
    %v1570 = vadd.f32 %v1480, %v1569
    %v1571 = vpop.f32.mrf.mxu0
    %v1572 = vadd.f32 %v1480, %v1571
    %1573 = vmatmul.bf16.gmra.mxu0 %v1459
    %v1574 = vpop.f32.mrf.mxu0
    %v1575 = vadd.f32 %v1480, %v1574
    %v1576 = vpop.f32.mrf.mxu0
    %v1577 = vadd.f32 %v1480, %v1576
    %1578 = vdwg.mxu0
    %v1579 = vmax.f32 %v1540, 0.0
    %v1580 = vmax.f32 %v1542, 0.0
    %v1581 = vmax.f32 %v1545, 0.0
    %v1582 = vmax.f32 %v1547, 0.0
    %v1583 = vmax.f32 %v1550, 0.0
    %v1584 = vmax.f32 %v1552, 0.0
    %v1585 = vmax.f32 %v1555, 0.0
    %v1586 = vmax.f32 %v1557, 0.0
    %v1587 = vmax.f32 %v1560, 0.0
    %v1588 = vmax.f32 %v1562, 0.0
    %v1589 = vmax.f32 %v1565, 0.0
    %v1590 = vmax.f32 %v1567, 0.0
    %v1591 = vmax.f32 %v1570, 0.0
    %v1592 = vmax.f32 %v1572, 0.0
    %v1593 = vmax.f32 %v1575, 0.0
    %v1594 = vmax.f32 %v1577, 0.0
    %v1595 = vpack.c.bf16 %v1580, %v1579
    %v1596 = vpack.c.bf16 %v1582, %v1581
    %v1597 = vpack.c.bf16 %v1584, %v1583
    %v1598 = vpack.c.bf16 %v1586, %v1585
    %v1599 = vpack.c.bf16 %v1588, %v1587
    %v1600 = vpack.c.bf16 %v1590, %v1589
    %v1601 = vpack.c.bf16 %v1592, %v1591
    %v1602 = vpack.c.bf16 %v1594, %v1593
    %s1603 = scalar_lea.vmem [#allocation12], 128
    %v1604 = vld [vmem:[%s1603] sm:$0xf]
    %v1605 = vld [vmem:[%s1603 + $0x4] sm:$0xf]
    %v1606 = vld [vmem:[%s1603 + $0x8] sm:$0xf]
    %v1607 = vld [vmem:[%s1603 + $0xc] sm:$0xf]
    %v1608 = vld [vmem:[%s1603 + $0x10] sm:$0xf]
    %v1609 = vld [vmem:[%s1603 + $0x14] sm:$0xf]
    %v1610 = vld [vmem:[%s1603 + $0x18] sm:$0xf]
    %v1611 = vld [vmem:[%s1603 + $0x1c] sm:$0xf]
    %v1612 = vld [vmem:[%s1603 + $0x20] sm:$0xf]
    %v1613 = vld [vmem:[%s1603 + $0x24] sm:$0xf]
    %v1614 = vld [vmem:[%s1603 + $0x28] sm:$0xf]
    %v1615 = vld [vmem:[%s1603 + $0x2c] sm:$0xf]
    %v1616 = vld [vmem:[%s1603 + $0x30] sm:$0xf]
    %v1617 = vld [vmem:[%s1603 + $0x34] sm:$0xf]
    %v1618 = vld [vmem:[%s1603 + $0x38] sm:$0xf]
    %v1619 = vld [vmem:[%s1603 + $0x3c] sm:$0xf]
    %s1620 = scalar_lea.vmem %s7, 2
    %v1621 = vld [vmem:[%s1620] sm:$0x1]
    %v1623 = vperm.slane %v1621, 0
    %v1641 = vunpack.c.l.b16 %v1604
    %v1642 = vunpack.c.l.b16 %v1605
    %v1643 = vunpack.c.l.b16 %v1606
    %v1644 = vunpack.c.l.b16 %v1607
    %v1645 = vunpack.c.l.b16 %v1608
    %v1646 = vunpack.c.l.b16 %v1609
    %v1647 = vunpack.c.l.b16 %v1610
    %v1648 = vunpack.c.l.b16 %v1611
    %v1649 = vunpack.c.l.b16 %v1612
    %v1650 = vunpack.c.l.b16 %v1613
    %v1651 = vunpack.c.l.b16 %v1614
    %v1652 = vunpack.c.l.b16 %v1615
    %v1653 = vunpack.c.l.b16 %v1616
    %v1654 = vunpack.c.l.b16 %v1617
    %v1655 = vunpack.c.l.b16 %v1618
    %v1656 = vunpack.c.l.b16 %v1619
    %v1657 = vpack.c.b16 %v1642, %v1641
    %v1658 = vpack.c.b16 %v1644, %v1643
    %v1659 = vpack.c.b16 %v1646, %v1645
    %v1660 = vpack.c.b16 %v1648, %v1647
    %v1661 = vpack.c.b16 %v1650, %v1649
    %v1662 = vpack.c.b16 %v1652, %v1651
    %v1663 = vpack.c.b16 %v1654, %v1653
    %v1664 = vpack.c.b16 %v1656, %v1655
    %1673 = vmatpush.bf16.msra.mxu0 %v1664
    %1674 = vmatpush.bf16.msra.mxu0 %v1663
    %1675 = vmatpush.bf16.msra.mxu0 %v1662
    %1676 = vmatpush.bf16.msra.mxu0 %v1661
    %1677 = vmatpush.bf16.msra.mxu0 %v1660
    %1678 = vmatpush.bf16.msra.mxu0 %v1659
    %1679 = vmatpush.bf16.msra.mxu0 %v1658
    %1680 = vmatpush.bf16.msra.mxu0 %v1657
    %1681 = vmatmul.bf16.gmra.mxu0 %v1595
    %v1682 = vpop.f32.mrf.mxu0
    %v1683 = vadd.f32 %v1623, %v1682
    %v1684 = vpop.f32.mrf.mxu0
    %v1685 = vadd.f32 %v1623, %v1684
    %1686 = vmatmul.bf16.gmra.mxu0 %v1596
    %v1687 = vpop.f32.mrf.mxu0
    %v1688 = vadd.f32 %v1623, %v1687
    %v1689 = vpop.f32.mrf.mxu0
    %v1690 = vadd.f32 %v1623, %v1689
    %1691 = vmatmul.bf16.gmra.mxu0 %v1597
    %v1692 = vpop.f32.mrf.mxu0
    %v1693 = vadd.f32 %v1623, %v1692
    %v1694 = vpop.f32.mrf.mxu0
    %v1695 = vadd.f32 %v1623, %v1694
    %1696 = vmatmul.bf16.gmra.mxu0 %v1598
    %v1697 = vpop.f32.mrf.mxu0
    %v1698 = vadd.f32 %v1623, %v1697
    %v1699 = vpop.f32.mrf.mxu0
    %v1700 = vadd.f32 %v1623, %v1699
    %1701 = vmatmul.bf16.gmra.mxu0 %v1599
    %v1702 = vpop.f32.mrf.mxu0
    %v1703 = vadd.f32 %v1623, %v1702
    %v1704 = vpop.f32.mrf.mxu0
    %v1705 = vadd.f32 %v1623, %v1704
    %1706 = vmatmul.bf16.gmra.mxu0 %v1600
    %v1707 = vpop.f32.mrf.mxu0
    %v1708 = vadd.f32 %v1623, %v1707
    %v1709 = vpop.f32.mrf.mxu0
    %v1710 = vadd.f32 %v1623, %v1709
    %1711 = vmatmul.bf16.gmra.mxu0 %v1601
    %v1712 = vpop.f32.mrf.mxu0
    %v1713 = vadd.f32 %v1623, %v1712
    %v1714 = vpop.f32.mrf.mxu0
    %v1715 = vadd.f32 %v1623, %v1714
    %1716 = vmatmul.bf16.gmra.mxu0 %v1602
    %v1717 = vpop.f32.mrf.mxu0
    %v1718 = vadd.f32 %v1623, %v1717
    %v1719 = vpop.f32.mrf.mxu0
    %v1720 = vadd.f32 %v1623, %v1719
    %1721 = vdwg.mxu0
    %v1722 = vmax.f32 %v1683, 0.0
    %v1723 = vmax.f32 %v1685, 0.0
    %v1724 = vmax.f32 %v1688, 0.0
    %v1725 = vmax.f32 %v1690, 0.0
    %v1726 = vmax.f32 %v1693, 0.0
    %v1727 = vmax.f32 %v1695, 0.0
    %v1728 = vmax.f32 %v1698, 0.0
    %v1729 = vmax.f32 %v1700, 0.0
    %v1730 = vmax.f32 %v1703, 0.0
    %v1731 = vmax.f32 %v1705, 0.0
    %v1732 = vmax.f32 %v1708, 0.0
    %v1733 = vmax.f32 %v1710, 0.0
    %v1734 = vmax.f32 %v1713, 0.0
    %v1735 = vmax.f32 %v1715, 0.0
    %v1736 = vmax.f32 %v1718, 0.0
    %v1737 = vmax.f32 %v1720, 0.0
    %s1738 = scalar_lea.vmem [#allocation13], 2
    %v1739 = vld [vmem:[%s1738] sm:$0x1]
    %v1741 = vperm.slane %v1739, 0
    %v1743 = vmul.f32 %v1722, %v1741
    %v1744 = vmul.f32 %v1723, %v1741
    %v1745 = vmul.f32 %v1724, %v1741
    %v1746 = vmul.f32 %v1725, %v1741
    %v1747 = vmul.f32 %v1726, %v1741
    %v1748 = vmul.f32 %v1727, %v1741
    %v1749 = vmul.f32 %v1728, %v1741
    %v1750 = vmul.f32 %v1729, %v1741
    %v1751 = vmul.f32 %v1730, %v1741
    %v1752 = vmul.f32 %v1731, %v1741
    %v1753 = vmul.f32 %v1732, %v1741
    %v1754 = vmul.f32 %v1733, %v1741
    %v1755 = vmul.f32 %v1734, %v1741
    %v1756 = vmul.f32 %v1735, %v1741
    %v1757 = vmul.f32 %v1736, %v1741
    %v1758 = vmul.f32 %v1737, %v1741
    %s1759 = scalar_lea.vmem [#allocation15], 2
    %v1760 = vld [vmem:[%s1759] sm:$0x1]
    %v1762 = vperm.slane %v1760, 0
    %v1764 = vadd.f32 %v1743, %v1762
    %v1765 = vadd.f32 %v1744, %v1762
    %v1766 = vadd.f32 %v1745, %v1762
    %v1767 = vadd.f32 %v1746, %v1762
    %v1768 = vadd.f32 %v1747, %v1762
    %v1769 = vadd.f32 %v1748, %v1762
    %v1770 = vadd.f32 %v1749, %v1762
    %v1771 = vadd.f32 %v1750, %v1762
    %v1772 = vadd.f32 %v1751, %v1762
    %v1773 = vadd.f32 %v1752, %v1762
    %v1774 = vadd.f32 %v1753, %v1762
    %v1775 = vadd.f32 %v1754, %v1762
    %v1776 = vadd.f32 %v1755, %v1762
    %v1777 = vadd.f32 %v1756, %v1762
    %v1778 = vadd.f32 %v1757, %v1762
    %v1779 = vadd.f32 %v1758, %v1762
    %v1780 = vmax.f32 %v1764, 0.0
    %v1781 = vmax.f32 %v1765, 0.0
    %v1782 = vmax.f32 %v1766, 0.0
    %v1783 = vmax.f32 %v1767, 0.0
    %v1784 = vmax.f32 %v1768, 0.0
    %v1785 = vmax.f32 %v1769, 0.0
    %v1786 = vmax.f32 %v1770, 0.0
    %v1787 = vmax.f32 %v1771, 0.0
    %v1788 = vmax.f32 %v1772, 0.0
    %v1789 = vmax.f32 %v1773, 0.0
    %v1790 = vmax.f32 %v1774, 0.0
    %v1791 = vmax.f32 %v1775, 0.0
    %v1792 = vmax.f32 %v1776, 0.0
    %v1793 = vmax.f32 %v1777, 0.0
    %v1794 = vmax.f32 %v1778, 0.0
    %v1795 = vmax.f32 %v1779, 0.0
    %v1796 = vpack.c.bf16 %v1781, %v1780
    %v1797 = vpack.c.bf16 %v1783, %v1782
    %v1798 = vpack.c.bf16 %v1785, %v1784
    %v1799 = vpack.c.bf16 %v1787, %v1786
    %v1800 = vpack.c.bf16 %v1789, %v1788
    %v1801 = vpack.c.bf16 %v1791, %v1790
    %v1802 = vpack.c.bf16 %v1793, %v1792
    %v1803 = vpack.c.bf16 %v1795, %v1794
    %v1804 = vld [vmem:[#allocation9] sm:$0xf]
    %1805 = vmatpush.bf16.msra.mxu0 %v1803
    %1806 = vmatpush.bf16.msra.mxu0 %v1802
    %1807 = vmatpush.bf16.msra.mxu0 %v1801
    %1808 = vmatpush.bf16.msra.mxu0 %v1800
    %1809 = vmatpush.bf16.msra.mxu0 %v1799
    %1810 = vmatpush.bf16.msra.mxu0 %v1798
    %1811 = vmatpush.bf16.msra.mxu0 %v1797
    %1812 = vmatpush.bf16.msra.mxu0 %v1796
    %1813 = vmatmul.bf16.gmra.mxu0 %v1804
    %v1814 = vpop.f32.mrf.mxu0
    %v1815 = vadd.f32 0.0, %v1814
    %v1816 = vpop.f32.mrf.mxu0
    %1817 = vdwg.mxu0
    %v1818 = vpack.c.bf16 %v1815, %v1815
    %v1819 = vld [vmem:[#allocation16] sm:$0xf]
    %v1820 = vld [vmem:[#allocation16 + $0x4] sm:$0xf]
    %v1821 = vld [vmem:[#allocation16 + $0x8] sm:$0xf]
    %v1822 = vld [vmem:[#allocation16 + $0xc] sm:$0xf]
    %v1823 = vld [vmem:[#allocation16 + $0x10] sm:$0xf]
    %v1824 = vld [vmem:[#allocation16 + $0x14] sm:$0xf]
    %v1825 = vld [vmem:[#allocation16 + $0x18] sm:$0xf]
    %v1826 = vld [vmem:[#allocation16 + $0x1c] sm:$0xf]
    %v1827 = vld [vmem:[#allocation16 + $0x20] sm:$0xf]
    %v1828 = vld [vmem:[#allocation16 + $0x24] sm:$0xf]
    %v1829 = vld [vmem:[#allocation16 + $0x28] sm:$0xf]
    %v1830 = vld [vmem:[#allocation16 + $0x2c] sm:$0xf]
    %v1831 = vld [vmem:[#allocation16 + $0x30] sm:$0xf]
    %v1832 = vld [vmem:[#allocation16 + $0x34] sm:$0xf]
    %v1833 = vld [vmem:[#allocation16 + $0x38] sm:$0xf]
    %v1834 = vld [vmem:[#allocation16 + $0x3c] sm:$0xf]
    %v1835 = vld [vmem:[%s11] sm:$0x1]
    %v1837 = vperm.slane %v1835, 0
    %v1855 = vunpack.c.l.b16 %v1819
    %v1856 = vunpack.c.l.b16 %v1820
    %v1857 = vunpack.c.l.b16 %v1821
    %v1858 = vunpack.c.l.b16 %v1822
    %v1859 = vunpack.c.l.b16 %v1823
    %v1860 = vunpack.c.l.b16 %v1824
    %v1861 = vunpack.c.l.b16 %v1825
    %v1862 = vunpack.c.l.b16 %v1826
    %v1863 = vunpack.c.l.b16 %v1827
    %v1864 = vunpack.c.l.b16 %v1828
    %v1865 = vunpack.c.l.b16 %v1829
    %v1866 = vunpack.c.l.b16 %v1830
    %v1867 = vunpack.c.l.b16 %v1831
    %v1868 = vunpack.c.l.b16 %v1832
    %v1869 = vunpack.c.l.b16 %v1833
    %v1870 = vunpack.c.l.b16 %v1834
    %v1871 = vpack.c.b16 %v1856, %v1855
    %v1872 = vpack.c.b16 %v1858, %v1857
    %v1873 = vpack.c.b16 %v1860, %v1859
    %v1874 = vpack.c.b16 %v1862, %v1861
    %v1875 = vpack.c.b16 %v1864, %v1863
    %v1876 = vpack.c.b16 %v1866, %v1865
    %v1877 = vpack.c.b16 %v1868, %v1867
    %v1878 = vpack.c.b16 %v1870, %v1869
    %1887 = vmatpush.bf16.msra.mxu0 %v1878
    %1888 = vmatpush.bf16.msra.mxu0 %v1877
    %1889 = vmatpush.bf16.msra.mxu0 %v1876
    %1890 = vmatpush.bf16.msra.mxu0 %v1875
    %1891 = vmatpush.bf16.msra.mxu0 %v1874
    %1892 = vmatpush.bf16.msra.mxu0 %v1873
    %1893 = vmatpush.bf16.msra.mxu0 %v1872
    %1894 = vmatpush.bf16.msra.mxu0 %v1871
    %1895 = vmatmul.bf16.gmra.mxu0 %v1818
    %v1896 = vpop.f32.mrf.mxu0
    %v1897 = vadd.f32 %v1837, %v1896
    %v1898 = vpop.f32.mrf.mxu0
    %1899 = vdwg.mxu0
    %v1900 = vmax.f32 %v1897, 0.0
    %v1901 = vpack.c.bf16 %v1900, %v1900
    %v1902 = vld [vmem:[#allocation18] sm:$0xf]
    %v1903 = vld [vmem:[#allocation18 + $0x4] sm:$0xf]
    %v1904 = vld [vmem:[#allocation18 + $0x8] sm:$0xf]
    %v1905 = vld [vmem:[#allocation18 + $0xc] sm:$0xf]
    %v1906 = vld [vmem:[#allocation18 + $0x10] sm:$0xf]
    %v1907 = vld [vmem:[#allocation18 + $0x14] sm:$0xf]
    %v1908 = vld [vmem:[#allocation18 + $0x18] sm:$0xf]
    %v1909 = vld [vmem:[#allocation18 + $0x1c] sm:$0xf]
    %v1910 = vld [vmem:[#allocation18 + $0x20] sm:$0xf]
    %v1911 = vld [vmem:[#allocation18 + $0x24] sm:$0xf]
    %v1912 = vld [vmem:[#allocation18 + $0x28] sm:$0xf]
    %v1913 = vld [vmem:[#allocation18 + $0x2c] sm:$0xf]
    %v1914 = vld [vmem:[#allocation18 + $0x30] sm:$0xf]
    %v1915 = vld [vmem:[#allocation18 + $0x34] sm:$0xf]
    %v1916 = vld [vmem:[#allocation18 + $0x38] sm:$0xf]
    %v1917 = vld [vmem:[#allocation18 + $0x3c] sm:$0xf]
    %v1918 = vld [vmem:[%s13] sm:$0x1]
    %v1920 = vperm.slane %v1918, 0
    %v1938 = vunpack.c.l.b16 %v1902
    %v1939 = vunpack.c.l.b16 %v1903
    %v1940 = vunpack.c.l.b16 %v1904
    %v1941 = vunpack.c.l.b16 %v1905
    %v1942 = vunpack.c.l.b16 %v1906
    %v1943 = vunpack.c.l.b16 %v1907
    %v1944 = vunpack.c.l.b16 %v1908
    %v1945 = vunpack.c.l.b16 %v1909
    %v1946 = vunpack.c.l.b16 %v1910
    %v1947 = vunpack.c.l.b16 %v1911
    %v1948 = vunpack.c.l.b16 %v1912
    %v1949 = vunpack.c.l.b16 %v1913
    %v1950 = vunpack.c.l.b16 %v1914
    %v1951 = vunpack.c.l.b16 %v1915
    %v1952 = vunpack.c.l.b16 %v1916
    %v1953 = vunpack.c.l.b16 %v1917
    %v1954 = vpack.c.b16 %v1939, %v1938
    %v1955 = vpack.c.b16 %v1941, %v1940
    %v1956 = vpack.c.b16 %v1943, %v1942
    %v1957 = vpack.c.b16 %v1945, %v1944
    %v1958 = vpack.c.b16 %v1947, %v1946
    %v1959 = vpack.c.b16 %v1949, %v1948
    %v1960 = vpack.c.b16 %v1951, %v1950
    %v1961 = vpack.c.b16 %v1953, %v1952
    %1970 = vmatpush.bf16.msra.mxu0 %v1961
    %1971 = vmatpush.bf16.msra.mxu0 %v1960
    %1972 = vmatpush.bf16.msra.mxu0 %v1959
    %1973 = vmatpush.bf16.msra.mxu0 %v1958
    %1974 = vmatpush.bf16.msra.mxu0 %v1957
    %1975 = vmatpush.bf16.msra.mxu0 %v1956
    %1976 = vmatpush.bf16.msra.mxu0 %v1955
    %1977 = vmatpush.bf16.msra.mxu0 %v1954
    %1978 = vmatmul.bf16.gmra.mxu0 %v1901
    %v1979 = vpop.f32.mrf.mxu0
    %v1980 = vadd.f32 %v1920, %v1979
    %v1981 = vpop.f32.mrf.mxu0
    %1982 = vdwg.mxu0
    %v1983 = vmax.f32 %v1980, 0.0
    %v1984 = vpack.c.bf16 %v1983, %v1983
    %v1985 = vld [vmem:[#allocation19] sm:$0xf]
    %v1986 = vld [vmem:[#allocation19 + $0x4] sm:$0xf]
    %v1987 = vld [vmem:[#allocation19 + $0x8] sm:$0xf]
    %v1988 = vld [vmem:[#allocation19 + $0xc] sm:$0xf]
    %v1989 = vld [vmem:[#allocation19 + $0x10] sm:$0xf]
    %v1990 = vld [vmem:[#allocation19 + $0x14] sm:$0xf]
    %v1991 = vld [vmem:[#allocation19 + $0x18] sm:$0xf]
    %v1992 = vld [vmem:[#allocation19 + $0x1c] sm:$0xf]
    %v1993 = vld [vmem:[#allocation19 + $0x20] sm:$0xf]
    %v1994 = vld [vmem:[#allocation19 + $0x24] sm:$0xf]
    %v1995 = vld [vmem:[#allocation19 + $0x28] sm:$0xf]
    %v1996 = vld [vmem:[#allocation19 + $0x2c] sm:$0xf]
    %v1997 = vld [vmem:[#allocation19 + $0x30] sm:$0xf]
    %v1998 = vld [vmem:[#allocation19 + $0x34] sm:$0xf]
    %v1999 = vld [vmem:[#allocation19 + $0x38] sm:$0xf]
    %v2000 = vld [vmem:[#allocation19 + $0x3c] sm:$0xf]
    %v2001 = vld [vmem:[%s15] sm:$0x1]
    %v2003 = vperm.slane %v2001, 0
    %v2021 = vunpack.c.l.b16 %v1985
    %v2022 = vunpack.c.l.b16 %v1986
    %v2023 = vunpack.c.l.b16 %v1987
    %v2024 = vunpack.c.l.b16 %v1988
    %v2025 = vunpack.c.l.b16 %v1989
    %v2026 = vunpack.c.l.b16 %v1990
    %v2027 = vunpack.c.l.b16 %v1991
    %v2028 = vunpack.c.l.b16 %v1992
    %v2029 = vunpack.c.l.b16 %v1993
    %v2030 = vunpack.c.l.b16 %v1994
    %v2031 = vunpack.c.l.b16 %v1995
    %v2032 = vunpack.c.l.b16 %v1996
    %v2033 = vunpack.c.l.b16 %v1997
    %v2034 = vunpack.c.l.b16 %v1998
    %v2035 = vunpack.c.l.b16 %v1999
    %v2036 = vunpack.c.l.b16 %v2000
    %v2037 = vpack.c.b16 %v2022, %v2021
    %v2038 = vpack.c.b16 %v2024, %v2023
    %v2039 = vpack.c.b16 %v2026, %v2025
    %v2040 = vpack.c.b16 %v2028, %v2027
    %v2041 = vpack.c.b16 %v2030, %v2029
    %v2042 = vpack.c.b16 %v2032, %v2031
    %v2043 = vpack.c.b16 %v2034, %v2033
    %v2044 = vpack.c.b16 %v2036, %v2035
    %2053 = vmatpush.bf16.msra.mxu0 %v2044
    %2054 = vmatpush.bf16.msra.mxu0 %v2043
    %2055 = vmatpush.bf16.msra.mxu0 %v2042
    %2056 = vmatpush.bf16.msra.mxu0 %v2041
    %2057 = vmatpush.bf16.msra.mxu0 %v2040
    %2058 = vmatpush.bf16.msra.mxu0 %v2039
    %2059 = vmatpush.bf16.msra.mxu0 %v2038
    %2060 = vmatpush.bf16.msra.mxu0 %v2037
    %2061 = vmatmul.bf16.gmra.mxu0 %v1984
    %v2062 = vpop.f32.mrf.mxu0
    %v2063 = vadd.f32 %v2003, %v2062
    %v2064 = vpop.f32.mrf.mxu0
    %2065 = vdwg.mxu0
    %v2066 = vlaneseq
    %v2067 = vand.u32 %v2066, 127
    %vm2068 = vcmp.lt.s32.totalorder %v2067, 4
    %v2069 = vsel %vm2068, %v2063, -1e+30
    %2070 = vmax.xlane.f32.xlu0 %v2069
    %v2071 = vpop.xlane.xlu0 %2070
    %v2072 = vsub.f32 %v2069, %v2071
    %v2073 = vmul.f32 %v2072, 1.442695
    %v2074 = vpow.pop %v2073
    %v2075 = vsel %vm2068, %v2074, 0.0
    %2076 = vadd.xlane.f32.xlu0 %v2075
    %v2077 = vpop.xlane.xlu0 %2076
    %v2078 = vlog2.pop %v2077
    %v2079 = vmul.f32 %v2078, 0.6931472
    %v2080 = vsub.f32 %v2072, %v2079
    %2081 = vst [vmem:[#allocation21] sm:$0xff] %v2080
    // Predicated region
    $region102: #{tpu_custom_call.1} parent=1 // pred_check
      _
    $region103: #{tpu_custom_call.1} parent=1 // pred_check_branch
      %2083 = sbr.rel (0) target = $region105
    $region104: #{tpu_custom_call.1} parent=1 // pred_region
      %2085 = vsyncadd [#allocation6], 0
      %s2087 = sshll.u32 [#allocation21], 4
      %s2088 = int_to_ptr.vmem [resolvable:$true] %s2087
      %s2089 = sshll.u32 %s16, 4
      %s2090 = int_to_ptr.hbm [resolvable:$true] %s2089
      %2092 = dma.vmem_to_hbm [thread:$0]  %s2088, 128, %s2090, [#allocation6]
    $region105: #{tpu_custom_call.1} parent=1 // pred_fallthru
      _
    // Predicated region
    $region106: #{tpu_custom_call.1} parent=1 // pred_check
      _
    $region107: #{tpu_custom_call.1} parent=1 // pred_check_branch
      %2094 = sbr.rel (0) target = $region109
    $region108: #{tpu_custom_call.1} parent=1 // pred_region
      %2096 = dma.done [#allocation6], 128
    $region109: #{tpu_custom_call.1} parent=1 // pred_fallthru
      _
    %2097 = vsyncpa [#allocation5], 1
    %2098 = vsyncpa [#allocation8], 1
    %2099 = vsyncpa [#allocation11], 1
    %2100 = vsyncpa [#allocation14], 1
    %2101 = vsyncpa [#allocation17], 1
    %2102 = vsyncpa [#allocation20], 1
    %2103 = vsyncpa [#allocation6], 1

</llo_original>
